<compile_context>
chip_gen: v6e
topology: v6e:2x2x1
jax: 0.10.0
libtpu: 0.0.40
codegen_flags: <defaults>
</compile_context>

<pallas_src>
import functools

import jax
import jax.numpy as jnp
from jax.experimental import pallas as pl
from jax.experimental.pallas import tpu as pltpu

C_IN = 384
C_MID = 48
C_OUT = 192


def _fused_1x1_kernel(x_ref, w1_ref, b1_ref, w2_ref, b2_ref, o_ref):
    # x_ref:  (C_IN, tp)     channels x pixel tile
    # w1_ref: (C_MID, C_IN)  PyTorch layout (out, in)
    # b1_ref: (C_MID, 1)
    # w2_ref: (C_OUT, C_MID)
    # b2_ref: (C_OUT, 1)
    # o_ref:  (C_OUT, tp)
    h = jnp.dot(w1_ref[...], x_ref[...], preferred_element_type=jnp.float32)
    h = jnp.maximum(h + b1_ref[...], 0.0)
    y = jnp.dot(w2_ref[...], h, preferred_element_type=jnp.float32)
    o_ref[...] = jnp.maximum(y + b2_ref[...], 0.0)


def _num_tensorcores() -> int:
    """2 on v7x (two TensorCores per chip), else 1 (v5e / v6e)."""
    try:
        kind = jax.devices()[0].device_kind.lower()
    except Exception:
        return 1
    return 2 if ("v7" in kind or "7x" in kind) else 1


@functools.partial(jax.jit, static_argnames=("num_pixel_blocks",))
def fused_conv_relu_conv_relu(x_nchw, w1, b1, w2, b2, *, num_pixel_blocks=1):
    """x_nchw: (N, 384, H, W) f32.  w1: (48, 384), b1: (48,), w2: (192, 48), b2: (192,)."""
    n, c, h, w = x_nchw.shape
    assert c == C_IN
    pix = n * h * w

    # (N, C, H, W) -> (C, N*H*W).  For N == 1 (the module's shape) this is a
    # pure reshape — no data movement.
    x_cm = jnp.moveaxis(x_nchw, 1, 0).reshape(c, pix)

    # Biases as (C, 1) columns, broadcast along the lane axis in-kernel.
    b1_2d = b1.reshape(C_MID, 1)
    b2_2d = b2.reshape(C_OUT, 1)

    if num_pixel_blocks <= 1:
        # Single grid step: block last dim == full array dim (729) is legal,
        # one contiguous x DMA in + one output DMA out, minimum latency.
        tp = pix
        grid = (1,)
        dim_sem = ("arbitrary",)
    else:
        # v7x: split pixels across TensorCores.  Tile is a multiple of 128;
        # the boundary block (e.g. 384 + 345 for 729 pixels) is OOB-masked by
        # Pallas on both the read and the write, so nothing is padded/sliced.
        tp = 128 * pl.cdiv(pl.cdiv(pix, num_pixel_blocks), 128)
        grid = (pl.cdiv(pix, tp),)
        dim_sem = (pltpu.CORE_PARALLEL,)

    flops = 2 * pix * (C_IN * C_MID + C_MID * C_OUT)
    bytes_accessed = 4 * (
        pix * C_IN                # x
        + C_MID * C_IN + C_MID    # w1, b1
        + C_OUT * C_MID + C_OUT   # w2, b2
        + pix * C_OUT             # out
    )

    out_cm = pl.pallas_call(
        _fused_1x1_kernel,
        out_shape=jax.ShapeDtypeStruct((C_OUT, pix), jnp.float32),
        grid_spec=pltpu.PrefetchScalarGridSpec(
            num_scalar_prefetch=0,
            grid=grid,
            in_specs=[
                pl.BlockSpec((C_IN, tp), lambda i: (0, i)),
                pl.BlockSpec((C_MID, C_IN), lambda i: (0, 0)),
                pl.BlockSpec((C_MID, 1), lambda i: (0, 0)),
                pl.BlockSpec((C_OUT, C_MID), lambda i: (0, 0)),
                pl.BlockSpec((C_OUT, 1), lambda i: (0, 0)),
            ],
            out_specs=pl.BlockSpec((C_OUT, tp), lambda i: (0, i)),
        ),
        compiler_params=pltpu.CompilerParams(dimension_semantics=dim_sem),
        cost_estimate=pl.CostEstimate(
            flops=flops, transcendentals=0, bytes_accessed=bytes_accessed),
    )(x_cm, w1, b1_2d, w2, b2_2d)

    # (C_OUT, pix) -> (C_OUT, N, H, W) -> (N, C_OUT, H, W)
    out = out_cm.reshape(C_OUT, n, h, w)
    return jnp.moveaxis(out, 0, 1)


def _reference(x_nchw, w1, b1, w2, b2):
    # Pure-JAX reference for the two 1x1 convs + relus (PyTorch semantics).
    n, c, h, w = x_nchw.shape
    xr = jnp.transpose(x_nchw, (0, 2, 3, 1)).reshape(-1, c)
    h1 = jnp.maximum(xr @ w1.T + b1, 0.0)
    h2 = jnp.maximum(h1 @ w2.T + b2, 0.0)
    return jnp.transpose(h2.reshape(n, h, w, C_OUT), (0, 3, 1, 2))


if __name__ == "__main__":
    key = jax.random.PRNGKey(0)
    kx, k1, k2, k3, k4 = jax.random.split(key, 5)

    # Input consistent with the module: NCHW, 384 channels, 27x27 spatial.
    x = jax.random.normal(kx, (1, C_IN, 27, 27), dtype=jnp.float32)

    # Deterministic parameter init (synthetic, kaiming-uniform-ish scale).
    lim1 = 1.0 / (C_IN ** 0.5)
    lim2 = 1.0 / (C_MID ** 0.5)
    w1 = jax.random.uniform(k1, (C_MID, C_IN), jnp.float32, -lim1, lim1)
    b1 = jax.random.uniform(k2, (C_MID,), jnp.float32, -lim1, lim1)
    w2 = jax.random.uniform(k3, (C_OUT, C_MID), jnp.float32, -lim2, lim2)
    b2 = jax.random.uniform(k4, (C_OUT,), jnp.float32, -lim2, lim2)

    # grid=(1,) on single-TC chips (v5e/v6e); 2-way CORE_PARALLEL split on v7x.
    nblocks = _num_tensorcores()

    out = fused_conv_relu_conv_relu(x, w1, b1, w2, b2, num_pixel_blocks=nblocks)
    out = jax.block_until_ready(out)

    ref = _reference(x, w1, b1, w2, b2)
    assert out.shape == (1, C_OUT, 27, 27), out.shape
    assert jnp.allclose(out, ref, atol=1e-4, rtol=1e-4)

    print("KERNEL_OK")
</pallas_src>

<mosaic_0001>
module attributes {stable_mosaic.version = 11 : i64} {
  func.func @_fused_1x1_kernel(%arg0: i32, %arg1: memref<384x729xf32, #tpu.memory_space<vmem>>, %arg2: memref<48x384xf32, #tpu.memory_space<vmem>>, %arg3: memref<48x1xf32, #tpu.memory_space<vmem>>, %arg4: memref<192x48xf32, #tpu.memory_space<vmem>>, %arg5: memref<192x1xf32, #tpu.memory_space<vmem>>, %arg6: memref<192x729xf32, #tpu.memory_space<vmem>>) attributes {dimension_semantics = [#tpu.dimension_semantics<arbitrary>], iteration_bounds = array<i64: 1>, scalar_prefetch = 0 : i64, scratch_operands = 0 : i64, tpu.core_type = #tpu.core_type<tc>, window_params = [{transform_indices = @transform_0, window_bounds = array<i64: 384, 729>}, {pipeline_mode = #tpu.pipeline_mode<synchronous>, transform_indices = @transform_1, window_bounds = array<i64: 48, 384>}, {pipeline_mode = #tpu.pipeline_mode<synchronous>, transform_indices = @transform_2, window_bounds = array<i64: 48, 1>}, {pipeline_mode = #tpu.pipeline_mode<synchronous>, transform_indices = @transform_3, window_bounds = array<i64: 192, 48>}, {pipeline_mode = #tpu.pipeline_mode<synchronous>, transform_indices = @transform_4, window_bounds = array<i64: 192, 1>}, {transform_indices = @transform_5, window_bounds = array<i64: 192, 729>}]} {
    %c0 = arith.constant 0 : index
    %c0_0 = arith.constant 0 : index
    %0 = vector.load %arg2[%c0, %c0_0] : memref<48x384xf32, #tpu.memory_space<vmem>>, vector<48x384xf32>
    %c0_1 = arith.constant 0 : index
    %c0_2 = arith.constant 0 : index
    %1 = vector.load %arg1[%c0_1, %c0_2] : memref<384x729xf32, #tpu.memory_space<vmem>>, vector<384x729xf32>
    %cst = arith.constant dense<0.000000e+00> : vector<48x729xf32>
    %2 = tpu.matmul %0, %1, %cst {dimension_numbers = #tpu.dot_dimension_numbers<[1], [0], [0], [1], [0, 0, 1, 1], [], []>} : vector<48x384xf32>, vector<384x729xf32>, vector<48x729xf32> -> vector<48x729xf32>
    %c0_3 = arith.constant 0 : index
    %c0_4 = arith.constant 0 : index
    %3 = vector.load %arg3[%c0_3, %c0_4] : memref<48x1xf32, #tpu.memory_space<vmem>>, vector<48x1xf32>
    %4 = vector.broadcast %3 : vector<48x1xf32> to vector<48x729xf32>
    %5 = arith.addf %2, %4 : vector<48x729xf32>
    %cst_5 = arith.constant 0.000000e+00 : f32
    %6 = vector.broadcast %cst_5 : f32 to vector<48x729xf32>
    %7 = arith.maximumf %5, %6 : vector<48x729xf32>
    %c0_6 = arith.constant 0 : index
    %c0_7 = arith.constant 0 : index
    %8 = vector.load %arg4[%c0_6, %c0_7] : memref<192x48xf32, #tpu.memory_space<vmem>>, vector<192x48xf32>
    %cst_8 = arith.constant dense<0.000000e+00> : vector<192x729xf32>
    %9 = tpu.matmul %8, %7, %cst_8 {dimension_numbers = #tpu.dot_dimension_numbers<[1], [0], [0], [1], [0, 0, 1, 1], [], []>} : vector<192x48xf32>, vector<48x729xf32>, vector<192x729xf32> -> vector<192x729xf32>
    %c0_9 = arith.constant 0 : index
    %c0_10 = arith.constant 0 : index
    %10 = vector.load %arg5[%c0_9, %c0_10] : memref<192x1xf32, #tpu.memory_space<vmem>>, vector<192x1xf32>
    %11 = vector.broadcast %10 : vector<192x1xf32> to vector<192x729xf32>
    %12 = arith.addf %9, %11 : vector<192x729xf32>
    %cst_11 = arith.constant 0.000000e+00 : f32
    %13 = vector.broadcast %cst_11 : f32 to vector<192x729xf32>
    %14 = arith.maximumf %12, %13 : vector<192x729xf32>
    %c0_12 = arith.constant 0 : index
    %c0_13 = arith.constant 0 : index
    %15 = vector.load %arg6[%c0_12, %c0_13] : memref<192x729xf32, #tpu.memory_space<vmem>>, vector<192x729xf32>
    tpu.vector_store %arg6[%c0_12, %c0_13], %14 {strides = array<i32>} : memref<192x729xf32, #tpu.memory_space<vmem>>, vector<192x729xf32>,
    return
  }
  func.func @transform_0(%arg0: i32) -> (i32, i32) {
    %c0_i32 = arith.constant 0 : i32
    %c0_i32_0 = arith.constant 0 : i32
    return %c0_i32, %arg0 : i32, i32
  }
  func.func @transform_1(%arg0: i32) -> (i32, i32) {
    %c0_i32 = arith.constant 0 : i32
    %c0_i32_0 = arith.constant 0 : i32
    %c0_i32_1 = arith.constant 0 : i32
    return %c0_i32, %c0_i32_0 : i32, i32
  }
  func.func @transform_2(%arg0: i32) -> (i32, i32) {
    %c0_i32 = arith.constant 0 : i32
    %c0_i32_0 = arith.constant 0 : i32
    %c0_i32_1 = arith.constant 0 : i32
    return %c0_i32, %c0_i32_0 : i32, i32
  }
  func.func @transform_3(%arg0: i32) -> (i32, i32) {
    %c0_i32 = arith.constant 0 : i32
    %c0_i32_0 = arith.constant 0 : i32
    %c0_i32_1 = arith.constant 0 : i32
    return %c0_i32, %c0_i32_0 : i32, i32
  }
  func.func @transform_4(%arg0: i32) -> (i32, i32) {
    %c0_i32 = arith.constant 0 : i32
    %c0_i32_0 = arith.constant 0 : i32
    %c0_i32_1 = arith.constant 0 : i32
    return %c0_i32, %c0_i32_0 : i32, i32
  }
  func.func @transform_5(%arg0: i32) -> (i32, i32) {
    %c0_i32 = arith.constant 0 : i32
    %c0_i32_0 = arith.constant 0 : i32
    return %c0_i32, %arg0 : i32, i32
  }
}

</mosaic_0001>

<llo_original>
// kernel: fused_conv_relu_conv_relu.1
$region0: #{fused_conv_relu_conv_relu.1}
  #allocation0 [shape = 'u32[]', space=smem, size = 0x4, offset = 0x4, fixed_abs, tag = 'smem constant byte address 0x4 - core index']
  #allocation1 [shape = 'u32[144,128]{1,0:T(1,128)}', space=vmem, size = 0x12000, scoped, tag = 'internal scratch']
  %s0 = inlined_call_operand.vmem [shape: f32[384,729], index: 0, kind: input, shape index: {}]
  %s1 = inlined_call_operand.vmem [shape: f32[48,384], index: 1, kind: input, shape index: {}]
  %s2 = inlined_call_operand.vmem [shape: f32[48,1], index: 2, kind: input, shape index: {}]
  %s3 = inlined_call_operand.vmem [shape: f32[192,48], index: 3, kind: input, shape index: {}]
  %s4 = inlined_call_operand.vmem [shape: f32[192,1], index: 4, kind: input, shape index: {}]
  %s5 = inlined_call_operand.vmem [shape: f32[192,729], index: 5, kind: output, shape index: {}]
  %s6 = sld [smem:[#allocation0]]
  $region30: #{fused_conv_relu_conv_relu.1} parent=0
    _
  %s8 = ssub.s32 1, %s6
  %s9 = scalar_select 0, %s8, %s6
  // Predicated region
  $region2: #{fused_conv_relu_conv_relu.1} parent=0 // pred_check
    _
  $region3: #{fused_conv_relu_conv_relu.1} parent=0 // pred_check_branch
    %11 = sbr.rel (0) target = $region5
  $region4: #{fused_conv_relu_conv_relu.1} parent=0 // pred_region
    _
  $region5: #{fused_conv_relu_conv_relu.1} parent=0 // pred_fallthru
    _
  // Predicated region
  $region6: #{fused_conv_relu_conv_relu.1} parent=0 // pred_check
    _
  $region7: #{fused_conv_relu_conv_relu.1} parent=0 // pred_check_branch
    %13 = sbr.rel (0) target = $region9
  $region8: #{fused_conv_relu_conv_relu.1} parent=0 // pred_region
    _
  $region9: #{fused_conv_relu_conv_relu.1} parent=0 // pred_fallthru
    _
  // Predicated region
  $region10: #{fused_conv_relu_conv_relu.1} parent=0 // pred_check
    _
  $region11: #{fused_conv_relu_conv_relu.1} parent=0 // pred_check_branch
    %15 = sbr.rel (0) target = $region13
  $region12: #{fused_conv_relu_conv_relu.1} parent=0 // pred_region
    _
  $region13: #{fused_conv_relu_conv_relu.1} parent=0 // pred_fallthru
    _
  // Predicated region
  $region14: #{fused_conv_relu_conv_relu.1} parent=0 // pred_check
    _
  $region15: #{fused_conv_relu_conv_relu.1} parent=0 // pred_check_branch
    %17 = sbr.rel (0) target = $region17
  $region16: #{fused_conv_relu_conv_relu.1} parent=0 // pred_region
    _
  $region17: #{fused_conv_relu_conv_relu.1} parent=0 // pred_fallthru
    _
  // Predicated region
  $region18: #{fused_conv_relu_conv_relu.1} parent=0 // pred_check
    _
  $region19: #{fused_conv_relu_conv_relu.1} parent=0 // pred_check_branch
    %19 = sbr.rel (0) target = $region21
  $region20: #{fused_conv_relu_conv_relu.1} parent=0 // pred_region
    _
  $region21: #{fused_conv_relu_conv_relu.1} parent=0 // pred_fallthru
    _
  %v20 = vld [vmem:[%s1] sm:$0xff]
  %v21 = vld [vmem:[%s1 + $0x8] sm:$0xff]
  %v22 = vld [vmem:[%s1 + $0x10] sm:$0xff]
  %v23 = vld [vmem:[%s1 + $0x18] sm:$0xff]
  %v24 = vld [vmem:[%s1 + $0x20] sm:$0xff]
  %v25 = vld [vmem:[%s1 + $0x28] sm:$0xff]
  %v26 = vld [vmem:[%s1 + $0x30] sm:$0xff]
  %v27 = vld [vmem:[%s1 + $0x38] sm:$0xff]
  %v28 = vld [vmem:[%s1 + $0x40] sm:$0xff]
  %v29 = vld [vmem:[%s1 + $0x48] sm:$0xff]
  %v30 = vld [vmem:[%s1 + $0x50] sm:$0xff]
  %v31 = vld [vmem:[%s1 + $0x58] sm:$0xff]
  %v32 = vld [vmem:[%s1 + $0x60] sm:$0xff]
  %v33 = vld [vmem:[%s1 + $0x68] sm:$0xff]
  %v34 = vld [vmem:[%s1 + $0x70] sm:$0xff]
  %v35 = vld [vmem:[%s1 + $0x78] sm:$0xff]
  %v36 = vld [vmem:[%s1 + $0x80] sm:$0xff]
  %v37 = vld [vmem:[%s1 + $0x88] sm:$0xff]
  %v38 = vld [vmem:[%s0] sm:$0xff]
  %v39 = vld [vmem:[%s0 + $0x8] sm:$0xff]
  %v40 = vld [vmem:[%s0 + $0x10] sm:$0xff]
  %v41 = vld [vmem:[%s0 + $0x18] sm:$0xff]
  %v42 = vld [vmem:[%s0 + $0x20] sm:$0xff]
  %v43 = vld [vmem:[%s0 + $0x28] sm:$0xff]
  %v44 = vld [vmem:[%s0 + $0x30] sm:$0xff]
  %v45 = vld [vmem:[%s0 + $0x38] sm:$0xff]
  %v46 = vld [vmem:[%s0 + $0x40] sm:$0xff]
  %v47 = vld [vmem:[%s0 + $0x48] sm:$0xff]
  %v48 = vld [vmem:[%s0 + $0x50] sm:$0xff]
  %v49 = vld [vmem:[%s0 + $0x58] sm:$0xff]
  %v50 = vld [vmem:[%s0 + $0x60] sm:$0xff]
  %v51 = vld [vmem:[%s0 + $0x68] sm:$0xff]
  %v52 = vld [vmem:[%s0 + $0x70] sm:$0xff]
  %v53 = vld [vmem:[%s0 + $0x78] sm:$0xff]
  %v54 = vld [vmem:[%s0 + $0x80] sm:$0xff]
  %v55 = vld [vmem:[%s0 + $0x88] sm:$0xff]
  %v56 = vld [vmem:[%s0 + $0x90] sm:$0xff]
  %v57 = vld [vmem:[%s0 + $0x98] sm:$0xff]
  %v58 = vld [vmem:[%s0 + $0xa0] sm:$0xff]
  %v59 = vld [vmem:[%s0 + $0xa8] sm:$0xff]
  %v60 = vld [vmem:[%s0 + $0xb0] sm:$0xff]
  %v61 = vld [vmem:[%s0 + $0xb8] sm:$0xff]
  %v62 = vld [vmem:[%s0 + $0xc0] sm:$0xff]
  %v63 = vld [vmem:[%s0 + $0xc8] sm:$0xff]
  %v64 = vld [vmem:[%s0 + $0xd0] sm:$0xff]
  %v65 = vld [vmem:[%s0 + $0xd8] sm:$0xff]
  %v66 = vld [vmem:[%s0 + $0xe0] sm:$0xff]
  %v67 = vld [vmem:[%s0 + $0xe8] sm:$0xff]
  %v68 = vld [vmem:[%s0 + $0xf0] sm:$0xff]
  %v69 = vld [vmem:[%s0 + $0xf8] sm:$0xff]
  %v70 = vld [vmem:[%s0 + $0x100] sm:$0xff]
  %v71 = vld [vmem:[%s0 + $0x108] sm:$0xff]
  %v72 = vld [vmem:[%s0 + $0x110] sm:$0xff]
  %v73 = vld [vmem:[%s0 + $0x118] sm:$0xff]
  %v74 = vld [vmem:[%s0 + $0x120] sm:$0xff]
  %v75 = vld [vmem:[%s0 + $0x128] sm:$0xff]
  %v76 = vld [vmem:[%s0 + $0x130] sm:$0xff]
  %v77 = vld [vmem:[%s0 + $0x138] sm:$0xff]
  %v78 = vld [vmem:[%s0 + $0x140] sm:$0xff]
  %v79 = vld [vmem:[%s0 + $0x148] sm:$0xff]
  %v80 = vld [vmem:[%s0 + $0x150] sm:$0xff]
  %v81 = vld [vmem:[%s0 + $0x158] sm:$0xff]
  %v82 = vld [vmem:[%s0 + $0x160] sm:$0xff]
  %v83 = vld [vmem:[%s0 + $0x168] sm:$0xff]
  %v84 = vld [vmem:[%s0 + $0x170] sm:$0xff]
  %v85 = vld [vmem:[%s0 + $0x178] sm:$0xff]
  %v86 = vld [vmem:[%s0 + $0x180] sm:$0xff]
  %v87 = vld [vmem:[%s0 + $0x188] sm:$0xff]
  %v88 = vld [vmem:[%s0 + $0x190] sm:$0xff]
  %v89 = vld [vmem:[%s0 + $0x198] sm:$0xff]
  %v90 = vld [vmem:[%s0 + $0x1a0] sm:$0xff]
  %v91 = vld [vmem:[%s0 + $0x1a8] sm:$0xff]
  %v92 = vld [vmem:[%s0 + $0x1b0] sm:$0xff]
  %v93 = vld [vmem:[%s0 + $0x1b8] sm:$0xff]
  %v94 = vld [vmem:[%s0 + $0x1c0] sm:$0xff]
  %v95 = vld [vmem:[%s0 + $0x1c8] sm:$0xff]
  %v96 = vld [vmem:[%s0 + $0x1d0] sm:$0xff]
  %v97 = vld [vmem:[%s0 + $0x1d8] sm:$0xff]
  %v98 = vld [vmem:[%s0 + $0x1e0] sm:$0xff]
  %v99 = vld [vmem:[%s0 + $0x1e8] sm:$0xff]
  %v100 = vld [vmem:[%s0 + $0x1f0] sm:$0xff]
  %v101 = vld [vmem:[%s0 + $0x1f8] sm:$0xff]
  %v102 = vld [vmem:[%s0 + $0x200] sm:$0xff]
  %v103 = vld [vmem:[%s0 + $0x208] sm:$0xff]
  %v104 = vld [vmem:[%s0 + $0x210] sm:$0xff]
  %v105 = vld [vmem:[%s0 + $0x218] sm:$0xff]
  %v106 = vld [vmem:[%s0 + $0x220] sm:$0xff]
  %v107 = vld [vmem:[%s0 + $0x228] sm:$0xff]
  %v108 = vld [vmem:[%s0 + $0x230] sm:$0xff]
  %v109 = vld [vmem:[%s0 + $0x238] sm:$0xff]
  %v110 = vld [vmem:[%s0 + $0x240] sm:$0xff]
  %v111 = vld [vmem:[%s0 + $0x248] sm:$0xff]
  %v112 = vld [vmem:[%s0 + $0x250] sm:$0xff]
  %v113 = vld [vmem:[%s0 + $0x258] sm:$0xff]
  %v114 = vld [vmem:[%s0 + $0x260] sm:$0xff]
  %v115 = vld [vmem:[%s0 + $0x268] sm:$0xff]
  %v116 = vld [vmem:[%s0 + $0x270] sm:$0xff]
  %v117 = vld [vmem:[%s0 + $0x278] sm:$0xff]
  %v118 = vld [vmem:[%s0 + $0x280] sm:$0xff]
  %v119 = vld [vmem:[%s0 + $0x288] sm:$0xff]
  %v120 = vld [vmem:[%s0 + $0x290] sm:$0xff]
  %v121 = vld [vmem:[%s0 + $0x298] sm:$0xff]
  %v122 = vld [vmem:[%s0 + $0x2a0] sm:$0xff]
  %v123 = vld [vmem:[%s0 + $0x2a8] sm:$0xff]
  %v124 = vld [vmem:[%s0 + $0x2b0] sm:$0xff]
  %v125 = vld [vmem:[%s0 + $0x2b8] sm:$0xff]
  %v126 = vld [vmem:[%s0 + $0x2c0] sm:$0xff]
  %v127 = vld [vmem:[%s0 + $0x2c8] sm:$0xff]
  %v128 = vld [vmem:[%s0 + $0x2d0] sm:$0xff]
  %v129 = vld [vmem:[%s0 + $0x2d8] sm:$0xff]
  %v130 = vld [vmem:[%s0 + $0x2e0] sm:$0xff]
  %v131 = vld [vmem:[%s0 + $0x2e8] sm:$0xff]
  %v132 = vld [vmem:[%s0 + $0x2f0] sm:$0xff]
  %v133 = vld [vmem:[%s0 + $0x2f8] sm:$0xff]
  %v134 = vld [vmem:[%s0 + $0x300] sm:$0xff]
  %v135 = vld [vmem:[%s0 + $0x308] sm:$0xff]
  %v136 = vld [vmem:[%s0 + $0x310] sm:$0xff]
  %v137 = vld [vmem:[%s0 + $0x318] sm:$0xff]
  %v138 = vld [vmem:[%s0 + $0x320] sm:$0xff]
  %v139 = vld [vmem:[%s0 + $0x328] sm:$0xff]
  %v140 = vld [vmem:[%s0 + $0x330] sm:$0xff]
  %v141 = vld [vmem:[%s0 + $0x338] sm:$0xff]
  %v142 = vld [vmem:[%s0 + $0x340] sm:$0xff]
  %v143 = vld [vmem:[%s0 + $0x348] sm:$0xff]
  %v144 = vld [vmem:[%s0 + $0x350] sm:$0xff]
  %v145 = vld [vmem:[%s0 + $0x358] sm:$0xff]
  %v146 = vld [vmem:[%s0 + $0x360] sm:$0xff]
  %v147 = vld [vmem:[%s0 + $0x368] sm:$0xff]
  %v148 = vld [vmem:[%s0 + $0x370] sm:$0xff]
  %v149 = vld [vmem:[%s0 + $0x378] sm:$0xff]
  %v150 = vld [vmem:[%s0 + $0x380] sm:$0xff]
  %v151 = vld [vmem:[%s0 + $0x388] sm:$0xff]
  %v152 = vld [vmem:[%s0 + $0x390] sm:$0xff]
  %v153 = vld [vmem:[%s0 + $0x398] sm:$0xff]
  %v154 = vld [vmem:[%s0 + $0x3a0] sm:$0xff]
  %v155 = vld [vmem:[%s0 + $0x3a8] sm:$0xff]
  %v156 = vld [vmem:[%s0 + $0x3b0] sm:$0xff]
  %v157 = vld [vmem:[%s0 + $0x3b8] sm:$0xff]
  %v158 = vld [vmem:[%s0 + $0x3c0] sm:$0xff]
  %v159 = vld [vmem:[%s0 + $0x3c8] sm:$0xff]
  %v160 = vld [vmem:[%s0 + $0x3d0] sm:$0xff]
  %v161 = vld [vmem:[%s0 + $0x3d8] sm:$0xff]
  %v162 = vld [vmem:[%s0 + $0x3e0] sm:$0xff]
  %v163 = vld [vmem:[%s0 + $0x3e8] sm:$0xff]
  %v164 = vld [vmem:[%s0 + $0x3f0] sm:$0xff]
  %v165 = vld [vmem:[%s0 + $0x3f8] sm:$0xff]
  %v166 = vld [vmem:[%s0 + $0x400] sm:$0xff]
  %v167 = vld [vmem:[%s0 + $0x408] sm:$0xff]
  %v168 = vld [vmem:[%s0 + $0x410] sm:$0xff]
  %v169 = vld [vmem:[%s0 + $0x418] sm:$0xff]
  %v170 = vld [vmem:[%s0 + $0x420] sm:$0xff]
  %v171 = vld [vmem:[%s0 + $0x428] sm:$0xff]
  %v172 = vld [vmem:[%s0 + $0x430] sm:$0xff]
  %v173 = vld [vmem:[%s0 + $0x438] sm:$0xff]
  %v174 = vld [vmem:[%s0 + $0x440] sm:$0xff]
  %v175 = vld [vmem:[%s0 + $0x448] sm:$0xff]
  %v176 = vld [vmem:[%s0 + $0x450] sm:$0xff]
  %v177 = vld [vmem:[%s0 + $0x458] sm:$0xff]
  %v178 = vld [vmem:[%s0 + $0x460] sm:$0xff]
  %v179 = vld [vmem:[%s0 + $0x468] sm:$0xff]
  %v180 = vld [vmem:[%s0 + $0x470] sm:$0xff]
  %v181 = vld [vmem:[%s0 + $0x478] sm:$0xff]
  %v182 = vld [vmem:[%s0 + $0x480] sm:$0xff]
  %v183 = vld [vmem:[%s0 + $0x488] sm:$0xff]
  %v184 = vld [vmem:[%s0 + $0x490] sm:$0xff]
  %v185 = vld [vmem:[%s0 + $0x498] sm:$0xff]
  %v186 = vld [vmem:[%s0 + $0x4a0] sm:$0xff]
  %v187 = vld [vmem:[%s0 + $0x4a8] sm:$0xff]
  %v188 = vld [vmem:[%s0 + $0x4b0] sm:$0xff]
  %v189 = vld [vmem:[%s0 + $0x4b8] sm:$0xff]
  %v190 = vld [vmem:[%s0 + $0x4c0] sm:$0xff]
  %v191 = vld [vmem:[%s0 + $0x4c8] sm:$0xff]
  %v192 = vld [vmem:[%s0 + $0x4d0] sm:$0xff]
  %v193 = vld [vmem:[%s0 + $0x4d8] sm:$0xff]
  %v194 = vld [vmem:[%s0 + $0x4e0] sm:$0xff]
  %v195 = vld [vmem:[%s0 + $0x4e8] sm:$0xff]
  %v196 = vld [vmem:[%s0 + $0x4f0] sm:$0xff]
  %v197 = vld [vmem:[%s0 + $0x4f8] sm:$0xff]
  %v198 = vld [vmem:[%s0 + $0x500] sm:$0xff]
  %v199 = vld [vmem:[%s0 + $0x508] sm:$0xff]
  %v200 = vld [vmem:[%s0 + $0x510] sm:$0xff]
  %v201 = vld [vmem:[%s0 + $0x518] sm:$0xff]
  %v202 = vld [vmem:[%s0 + $0x520] sm:$0xff]
  %v203 = vld [vmem:[%s0 + $0x528] sm:$0xff]
  %v204 = vld [vmem:[%s0 + $0x530] sm:$0xff]
  %v205 = vld [vmem:[%s0 + $0x538] sm:$0xff]
  %v206 = vld [vmem:[%s0 + $0x540] sm:$0xff]
  %v207 = vld [vmem:[%s0 + $0x548] sm:$0xff]
  %v208 = vld [vmem:[%s0 + $0x550] sm:$0xff]
  %v209 = vld [vmem:[%s0 + $0x558] sm:$0xff]
  %v210 = vld [vmem:[%s0 + $0x560] sm:$0xff]
  %v211 = vld [vmem:[%s0 + $0x568] sm:$0xff]
  %v212 = vld [vmem:[%s0 + $0x570] sm:$0xff]
  %v213 = vld [vmem:[%s0 + $0x578] sm:$0xff]
  %v214 = vld [vmem:[%s0 + $0x580] sm:$0xff]
  %v215 = vld [vmem:[%s0 + $0x588] sm:$0xff]
  %v216 = vld [vmem:[%s0 + $0x590] sm:$0xff]
  %v217 = vld [vmem:[%s0 + $0x598] sm:$0xff]
  %v218 = vld [vmem:[%s0 + $0x5a0] sm:$0xff]
  %v219 = vld [vmem:[%s0 + $0x5a8] sm:$0xff]
  %v220 = vld [vmem:[%s0 + $0x5b0] sm:$0xff]
  %v221 = vld [vmem:[%s0 + $0x5b8] sm:$0xff]
  %v222 = vld [vmem:[%s0 + $0x5c0] sm:$0xff]
  %v223 = vld [vmem:[%s0 + $0x5c8] sm:$0xff]
  %v224 = vld [vmem:[%s0 + $0x5d0] sm:$0xff]
  %v225 = vld [vmem:[%s0 + $0x5d8] sm:$0xff]
  %v226 = vld [vmem:[%s0 + $0x5e0] sm:$0xff]
  %v227 = vld [vmem:[%s0 + $0x5e8] sm:$0xff]
  %v228 = vld [vmem:[%s0 + $0x5f0] sm:$0xff]
  %v229 = vld [vmem:[%s0 + $0x5f8] sm:$0xff]
  %v230 = vld [vmem:[%s0 + $0x600] sm:$0xff]
  %v231 = vld [vmem:[%s0 + $0x608] sm:$0xff]
  %v232 = vld [vmem:[%s0 + $0x610] sm:$0xff]
  %v233 = vld [vmem:[%s0 + $0x618] sm:$0xff]
  %v234 = vld [vmem:[%s0 + $0x620] sm:$0xff]
  %v235 = vld [vmem:[%s0 + $0x628] sm:$0xff]
  %v236 = vld [vmem:[%s0 + $0x630] sm:$0xff]
  %v237 = vld [vmem:[%s0 + $0x638] sm:$0xff]
  %v238 = vld [vmem:[%s0 + $0x640] sm:$0xff]
  %v239 = vld [vmem:[%s0 + $0x648] sm:$0xff]
  %v240 = vld [vmem:[%s0 + $0x650] sm:$0xff]
  %v241 = vld [vmem:[%s0 + $0x658] sm:$0xff]
  %v242 = vld [vmem:[%s0 + $0x660] sm:$0xff]
  %v243 = vld [vmem:[%s0 + $0x668] sm:$0xff]
  %v244 = vld [vmem:[%s0 + $0x670] sm:$0xff]
  %v245 = vld [vmem:[%s0 + $0x678] sm:$0xff]
  %v246 = vld [vmem:[%s0 + $0x680] sm:$0xff]
  %v247 = vld [vmem:[%s0 + $0x688] sm:$0xff]
  %v248 = vld [vmem:[%s0 + $0x690] sm:$0xff]
  %v249 = vld [vmem:[%s0 + $0x698] sm:$0xff]
  %v250 = vld [vmem:[%s0 + $0x6a0] sm:$0xff]
  %v251 = vld [vmem:[%s0 + $0x6a8] sm:$0xff]
  %v252 = vld [vmem:[%s0 + $0x6b0] sm:$0xff]
  %v253 = vld [vmem:[%s0 + $0x6b8] sm:$0xff]
  %v254 = vld [vmem:[%s0 + $0x6c0] sm:$0xff]
  %v255 = vld [vmem:[%s0 + $0x6c8] sm:$0xff]
  %v256 = vld [vmem:[%s0 + $0x6d0] sm:$0xff]
  %v257 = vld [vmem:[%s0 + $0x6d8] sm:$0xff]
  %v258 = vld [vmem:[%s0 + $0x6e0] sm:$0xff]
  %v259 = vld [vmem:[%s0 + $0x6e8] sm:$0xff]
  %v260 = vld [vmem:[%s0 + $0x6f0] sm:$0xff]
  %v261 = vld [vmem:[%s0 + $0x6f8] sm:$0xff]
  %v262 = vld [vmem:[%s0 + $0x700] sm:$0xff]
  %v263 = vld [vmem:[%s0 + $0x708] sm:$0xff]
  %v264 = vld [vmem:[%s0 + $0x710] sm:$0xff]
  %v265 = vld [vmem:[%s0 + $0x718] sm:$0xff]
  %v266 = vld [vmem:[%s0 + $0x720] sm:$0xff]
  %v267 = vld [vmem:[%s0 + $0x728] sm:$0xff]
  %v268 = vld [vmem:[%s0 + $0x730] sm:$0xff]
  %v269 = vld [vmem:[%s0 + $0x738] sm:$0xff]
  %v270 = vld [vmem:[%s0 + $0x740] sm:$0xff]
  %v271 = vld [vmem:[%s0 + $0x748] sm:$0xff]
  %v272 = vld [vmem:[%s0 + $0x750] sm:$0xff]
  %v273 = vld [vmem:[%s0 + $0x758] sm:$0xff]
  %v274 = vld [vmem:[%s0 + $0x760] sm:$0xff]
  %v275 = vld [vmem:[%s0 + $0x768] sm:$0xff]
  %v276 = vld [vmem:[%s0 + $0x770] sm:$0xff]
  %v277 = vld [vmem:[%s0 + $0x778] sm:$0xff]
  %v278 = vld [vmem:[%s0 + $0x780] sm:$0xff]
  %v279 = vld [vmem:[%s0 + $0x788] sm:$0xff]
  %v280 = vld [vmem:[%s0 + $0x790] sm:$0xff]
  %v281 = vld [vmem:[%s0 + $0x798] sm:$0xff]
  %v282 = vld [vmem:[%s0 + $0x7a0] sm:$0xff]
  %v283 = vld [vmem:[%s0 + $0x7a8] sm:$0xff]
  %v284 = vld [vmem:[%s0 + $0x7b0] sm:$0xff]
  %v285 = vld [vmem:[%s0 + $0x7b8] sm:$0xff]
  %v286 = vld [vmem:[%s0 + $0x7c0] sm:$0xff]
  %v287 = vld [vmem:[%s0 + $0x7c8] sm:$0xff]
  %v288 = vld [vmem:[%s0 + $0x7d0] sm:$0xff]
  %v289 = vld [vmem:[%s0 + $0x7d8] sm:$0xff]
  %v290 = vld [vmem:[%s0 + $0x7e0] sm:$0xff]
  %v291 = vld [vmem:[%s0 + $0x7e8] sm:$0xff]
  %v292 = vld [vmem:[%s0 + $0x7f0] sm:$0xff]
  %v293 = vld [vmem:[%s0 + $0x7f8] sm:$0xff]
  %v294 = vld [vmem:[%s0 + $0x800] sm:$0xff]
  %v295 = vld [vmem:[%s0 + $0x808] sm:$0xff]
  %v296 = vld [vmem:[%s0 + $0x810] sm:$0xff]
  %v297 = vld [vmem:[%s0 + $0x818] sm:$0xff]
  %v298 = vld [vmem:[%s0 + $0x820] sm:$0xff]
  %v299 = vld [vmem:[%s0 + $0x828] sm:$0xff]
  %v300 = vld [vmem:[%s0 + $0x830] sm:$0xff]
  %v301 = vld [vmem:[%s0 + $0x838] sm:$0xff]
  %v302 = vld [vmem:[%s0 + $0x840] sm:$0xff]
  %v303 = vld [vmem:[%s0 + $0x848] sm:$0xff]
  %v304 = vld [vmem:[%s0 + $0x850] sm:$0xff]
  %v305 = vld [vmem:[%s0 + $0x858] sm:$0xff]
  %v306 = vld [vmem:[%s0 + $0x860] sm:$0xff]
  %v307 = vld [vmem:[%s0 + $0x868] sm:$0xff]
  %v308 = vld [vmem:[%s0 + $0x870] sm:$0xff]
  %v309 = vld [vmem:[%s0 + $0x878] sm:$0xff]
  %v310 = vld [vmem:[%s0 + $0x880] sm:$0xff]
  %v311 = vld [vmem:[%s0 + $0x888] sm:$0xff]
  %v312 = vld [vmem:[%s0 + $0x890] sm:$0xff]
  %v313 = vld [vmem:[%s0 + $0x898] sm:$0xff]
  %v314 = vld [vmem:[%s0 + $0x8a0] sm:$0xff]
  %v315 = vld [vmem:[%s0 + $0x8a8] sm:$0xff]
  %v316 = vld [vmem:[%s0 + $0x8b0] sm:$0xff]
  %v317 = vld [vmem:[%s0 + $0x8b8] sm:$0xff]
  %v318 = vld [vmem:[%s0 + $0x8c0] sm:$0xff]
  %v319 = vld [vmem:[%s0 + $0x8c8] sm:$0xff]
  %v320 = vld [vmem:[%s0 + $0x8d0] sm:$0xff]
  %v321 = vld [vmem:[%s0 + $0x8d8] sm:$0xff]
  %v322 = vld [vmem:[%s0 + $0x8e0] sm:$0xff]
  %v323 = vld [vmem:[%s0 + $0x8e8] sm:$0xff]
  %v324 = vld [vmem:[%s0 + $0x8f0] sm:$0xff]
  %v325 = vld [vmem:[%s0 + $0x8f8] sm:$0xff]
  %v326 = vld [vmem:[%s2] sm:$0xff]
  %v327 = vld [vmem:[%s2 + $0x8] sm:$0xff]
  %v328 = vld [vmem:[%s2 + $0x10] sm:$0xff]
  %v329 = vld [vmem:[%s2 + $0x18] sm:$0xff]
  %v330 = vld [vmem:[%s2 + $0x20] sm:$0xff]
  %v331 = vld [vmem:[%s2 + $0x28] sm:$0xff]
  %333 = vset.pattern.permute.xlu0 0
  %334 = vperm.xlu0 %333, %v326
  %v335 = vpop.permute.xlu0 %334
  %338 = vset.pattern.permute.xlu0 0
  %339 = vperm.xlu0 %338, %v327
  %v340 = vpop.permute.xlu0 %339
  %343 = vset.pattern.permute.xlu0 0
  %344 = vperm.xlu0 %343, %v328
  %v345 = vpop.permute.xlu0 %344
  %348 = vset.pattern.permute.xlu0 0
  %349 = vperm.xlu0 %348, %v329
  %v350 = vpop.permute.xlu0 %349
  %353 = vset.pattern.permute.xlu0 0
  %354 = vperm.xlu0 %353, %v330
  %v355 = vpop.permute.xlu0 %354
  %358 = vset.pattern.permute.xlu0 0
  %359 = vperm.xlu0 %358, %v331
  %v360 = vpop.permute.xlu0 %359
  %362 = vmatprep.subr.mxu0 %v129
  %363 = vmatpush1.msra.mxu0 %v128
  %364 = vmatprep.subr.mxu0 %v123
  %365 = vmatpush1.msra.mxu0 %v122
  %366 = vmatprep.subr.mxu0 %v117
  %367 = vmatpush1.msra.mxu0 %v116
  %368 = vmatprep.subr.mxu0 %v111
  %369 = vmatpush1.msra.mxu0 %v110
  %370 = vmatprep.subr.mxu0 %v105
  %371 = vmatpush1.msra.mxu0 %v104
  %372 = vmatprep.subr.mxu0 %v99
  %373 = vmatpush1.msra.mxu0 %v98
  %374 = vmatprep.subr.mxu0 %v93
  %375 = vmatpush1.msra.mxu0 %v92
  %376 = vmatprep.subr.mxu0 %v87
  %377 = vmatpush1.msra.mxu0 %v86
  %378 = vmatprep.subr.mxu0 %v81
  %379 = vmatpush1.msra.mxu0 %v80
  %380 = vmatprep.subr.mxu0 %v75
  %381 = vmatpush1.msra.mxu0 %v74
  %382 = vmatprep.subr.mxu0 %v69
  %383 = vmatpush1.msra.mxu0 %v68
  %384 = vmatprep.subr.mxu0 %v63
  %385 = vmatpush1.msra.mxu0 %v62
  %386 = vmatprep.subr.mxu0 %v57
  %387 = vmatpush1.msra.mxu0 %v56
  %388 = vmatprep.subr.mxu0 %v51
  %389 = vmatpush1.msra.mxu0 %v50
  %390 = vmatprep.subr.mxu0 %v45
  %391 = vmatpush1.msra.mxu0 %v44
  %392 = vmatprep.subr.mxu0 %v39
  %393 = vmatpush1.msra.mxu0 %v38
  %394 = vmatprep.subr.mxu0 %v225
  %395 = vmatpush2.msra.mxu0 %v224
  %396 = vmatprep.subr.mxu0 %v219
  %397 = vmatpush2.msra.mxu0 %v218
  %398 = vmatprep.subr.mxu0 %v213
  %399 = vmatpush2.msra.mxu0 %v212
  %400 = vmatprep.subr.mxu0 %v207
  %401 = vmatpush2.msra.mxu0 %v206
  %402 = vmatprep.subr.mxu0 %v201
  %403 = vmatpush2.msra.mxu0 %v200
  %404 = vmatprep.subr.mxu0 %v195
  %405 = vmatpush2.msra.mxu0 %v194
  %406 = vmatprep.subr.mxu0 %v189
  %407 = vmatpush2.msra.mxu0 %v188
  %408 = vmatprep.subr.mxu0 %v183
  %409 = vmatpush2.msra.mxu0 %v182
  %410 = vmatprep.subr.mxu0 %v177
  %411 = vmatpush2.msra.mxu0 %v176
  %412 = vmatprep.subr.mxu0 %v171
  %413 = vmatpush2.msra.mxu0 %v170
  %414 = vmatprep.subr.mxu0 %v165
  %415 = vmatpush2.msra.mxu0 %v164
  %416 = vmatprep.subr.mxu0 %v159
  %417 = vmatpush2.msra.mxu0 %v158
  %418 = vmatprep.subr.mxu0 %v153
  %419 = vmatpush2.msra.mxu0 %v152
  %420 = vmatprep.subr.mxu0 %v147
  %421 = vmatpush2.msra.mxu0 %v146
  %422 = vmatprep.subr.mxu0 %v141
  %423 = vmatpush2.msra.mxu0 %v140
  %424 = vmatprep.subr.mxu0 %v135
  %425 = vmatpush2.msra.mxu0 %v134
  %426 = vmatprep.mubr.f32.mxu0 %v21
  %427 = vmatmul.mubr.f32.gmra.mxu0 %v20
  %v428 = vpop.f32.mrf.mxu0
  %v429 = vadd.f32 %v335, %v428
  %v430 = vpop.f32.mrf.mxu0
  %v431 = vadd.f32 %v335, %v430
  %432 = vmatprep.mubr.f32.mxu0 %v24
  %433 = vmatmul.mubr.f32.gmra.mxu0 %v23
  %v434 = vpop.f32.mrf.mxu0
  %v435 = vadd.f32 %v340, %v434
  %v436 = vpop.f32.mrf.mxu0
  %v437 = vadd.f32 %v340, %v436
  %438 = vmatprep.mubr.f32.mxu0 %v27
  %439 = vmatmul.mubr.f32.gmra.mxu0 %v26
  %v440 = vpop.f32.mrf.mxu0
  %v441 = vadd.f32 %v345, %v440
  %v442 = vpop.f32.mrf.mxu0
  %v443 = vadd.f32 %v345, %v442
  %444 = vmatprep.mubr.f32.mxu0 %v30
  %445 = vmatmul.mubr.f32.gmra.mxu0 %v29
  %v446 = vpop.f32.mrf.mxu0
  %v447 = vadd.f32 %v350, %v446
  %v448 = vpop.f32.mrf.mxu0
  %v449 = vadd.f32 %v350, %v448
  %450 = vmatprep.mubr.f32.mxu0 %v33
  %451 = vmatmul.mubr.f32.gmra.mxu0 %v32
  %v452 = vpop.f32.mrf.mxu0
  %v453 = vadd.f32 %v355, %v452
  %v454 = vpop.f32.mrf.mxu0
  %v455 = vadd.f32 %v355, %v454
  %456 = vmatprep.mubr.f32.mxu0 %v36
  %457 = vmatmul.mubr.f32.gmra.mxu0 %v35
  %v458 = vpop.f32.mrf.mxu0
  %v459 = vadd.f32 %v360, %v458
  %v460 = vpop.f32.mrf.mxu0
  %v461 = vadd.f32 %v360, %v460
  %462 = vdwg.mxu0
  %463 = vmatprep.subr.mxu0 %v321
  %464 = vmatpush1.msra.mxu0 %v320
  %465 = vmatprep.subr.mxu0 %v315
  %466 = vmatpush1.msra.mxu0 %v314
  %467 = vmatprep.subr.mxu0 %v309
  %468 = vmatpush1.msra.mxu0 %v308
  %469 = vmatprep.subr.mxu0 %v303
  %470 = vmatpush1.msra.mxu0 %v302
  %471 = vmatprep.subr.mxu0 %v297
  %472 = vmatpush1.msra.mxu0 %v296
  %473 = vmatprep.subr.mxu0 %v291
  %474 = vmatpush1.msra.mxu0 %v290
  %475 = vmatprep.subr.mxu0 %v285
  %476 = vmatpush1.msra.mxu0 %v284
  %477 = vmatprep.subr.mxu0 %v279
  %478 = vmatpush1.msra.mxu0 %v278
  %479 = vmatprep.subr.mxu0 %v273
  %480 = vmatpush1.msra.mxu0 %v272
  %481 = vmatprep.subr.mxu0 %v267
  %482 = vmatpush1.msra.mxu0 %v266
  %483 = vmatprep.subr.mxu0 %v261
  %484 = vmatpush1.msra.mxu0 %v260
  %485 = vmatprep.subr.mxu0 %v255
  %486 = vmatpush1.msra.mxu0 %v254
  %487 = vmatprep.subr.mxu0 %v249
  %488 = vmatpush1.msra.mxu0 %v248
  %489 = vmatprep.subr.mxu0 %v243
  %490 = vmatpush1.msra.mxu0 %v242
  %491 = vmatprep.subr.mxu0 %v237
  %492 = vmatpush1.msra.mxu0 %v236
  %493 = vmatprep.subr.mxu0 %v231
  %494 = vmatpush1.msra.mxu0 %v230
  %495 = vmatprep.subr.mxu0 0.0
  %496 = vmatpush2.msra.mxu0 0.0
  %497 = vmatprep.subr.mxu0 0.0
  %498 = vmatpush2.msra.mxu0 0.0
  %499 = vmatprep.subr.mxu0 0.0
  %500 = vmatpush2.msra.mxu0 0.0
  %501 = vmatprep.subr.mxu0 0.0
  %502 = vmatpush2.msra.mxu0 0.0
  %503 = vmatprep.subr.mxu0 0.0
  %504 = vmatpush2.msra.mxu0 0.0
  %505 = vmatprep.subr.mxu0 0.0
  %506 = vmatpush2.msra.mxu0 0.0
  %507 = vmatprep.subr.mxu0 0.0
  %508 = vmatpush2.msra.mxu0 0.0
  %509 = vmatprep.subr.mxu0 0.0
  %510 = vmatpush2.msra.mxu0 0.0
  %511 = vmatprep.subr.mxu0 0.0
  %512 = vmatpush2.msra.mxu0 0.0
  %513 = vmatprep.subr.mxu0 0.0
  %514 = vmatpush2.msra.mxu0 0.0
  %515 = vmatprep.subr.mxu0 0.0
  %516 = vmatpush2.msra.mxu0 0.0
  %517 = vmatprep.subr.mxu0 0.0
  %518 = vmatpush2.msra.mxu0 0.0
  %519 = vmatprep.subr.mxu0 0.0
  %520 = vmatpush2.msra.mxu0 0.0
  %521 = vmatprep.subr.mxu0 0.0
  %522 = vmatpush2.msra.mxu0 0.0
  %523 = vmatprep.subr.mxu0 0.0
  %524 = vmatpush2.msra.mxu0 0.0
  %525 = vmatprep.subr.mxu0 0.0
  %526 = vmatpush2.msra.mxu0 0.0
  %527 = vmatprep.mubr.f32.mxu0 0.0
  %528 = vmatmul.mubr.f32.gmra.mxu0 %v22
  %v529 = vpop.f32.mrf.mxu0
  %v530 = vadd.f32 %v429, %v529
  %v531 = vpop.f32.mrf.mxu0
  %v532 = vadd.f32 %v431, %v531
  %533 = vmatprep.mubr.f32.mxu0 0.0
  %534 = vmatmul.mubr.f32.gmra.mxu0 %v25
  %v535 = vpop.f32.mrf.mxu0
  %v536 = vadd.f32 %v435, %v535
  %v537 = vpop.f32.mrf.mxu0
  %v538 = vadd.f32 %v437, %v537
  %539 = vmatprep.mubr.f32.mxu0 0.0
  %540 = vmatmul.mubr.f32.gmra.mxu0 %v28
  %v541 = vpop.f32.mrf.mxu0
  %v542 = vadd.f32 %v441, %v541
  %v543 = vpop.f32.mrf.mxu0
  %v544 = vadd.f32 %v443, %v543
  %545 = vmatprep.mubr.f32.mxu0 0.0
  %546 = vmatmul.mubr.f32.gmra.mxu0 %v31
  %v547 = vpop.f32.mrf.mxu0
  %v548 = vadd.f32 %v447, %v547
  %v549 = vpop.f32.mrf.mxu0
  %v550 = vadd.f32 %v449, %v549
  %551 = vmatprep.mubr.f32.mxu0 0.0
  %552 = vmatmul.mubr.f32.gmra.mxu0 %v34
  %v553 = vpop.f32.mrf.mxu0
  %v554 = vadd.f32 %v453, %v553
  %v555 = vpop.f32.mrf.mxu0
  %v556 = vadd.f32 %v455, %v555
  %557 = vmatprep.mubr.f32.mxu0 0.0
  %558 = vmatmul.mubr.f32.gmra.mxu0 %v37
  %v559 = vpop.f32.mrf.mxu0
  %v560 = vadd.f32 %v459, %v559
  %v561 = vpop.f32.mrf.mxu0
  %v562 = vadd.f32 %v461, %v561
  %563 = vdwg.mxu0
  %564 = vmatprep.subr.mxu0 %v131
  %565 = vmatpush1.msra.mxu0 %v130
  %566 = vmatprep.subr.mxu0 %v125
  %567 = vmatpush1.msra.mxu0 %v124
  %568 = vmatprep.subr.mxu0 %v119
  %569 = vmatpush1.msra.mxu0 %v118
  %570 = vmatprep.subr.mxu0 %v113
  %571 = vmatpush1.msra.mxu0 %v112
  %572 = vmatprep.subr.mxu0 %v107
  %573 = vmatpush1.msra.mxu0 %v106
  %574 = vmatprep.subr.mxu0 %v101
  %575 = vmatpush1.msra.mxu0 %v100
  %576 = vmatprep.subr.mxu0 %v95
  %577 = vmatpush1.msra.mxu0 %v94
  %578 = vmatprep.subr.mxu0 %v89
  %579 = vmatpush1.msra.mxu0 %v88
  %580 = vmatprep.subr.mxu0 %v83
  %581 = vmatpush1.msra.mxu0 %v82
  %582 = vmatprep.subr.mxu0 %v77
  %583 = vmatpush1.msra.mxu0 %v76
  %584 = vmatprep.subr.mxu0 %v71
  %585 = vmatpush1.msra.mxu0 %v70
  %586 = vmatprep.subr.mxu0 %v65
  %587 = vmatpush1.msra.mxu0 %v64
  %588 = vmatprep.subr.mxu0 %v59
  %589 = vmatpush1.msra.mxu0 %v58
  %590 = vmatprep.subr.mxu0 %v53
  %591 = vmatpush1.msra.mxu0 %v52
  %592 = vmatprep.subr.mxu0 %v47
  %593 = vmatpush1.msra.mxu0 %v46
  %594 = vmatprep.subr.mxu0 %v41
  %595 = vmatpush1.msra.mxu0 %v40
  %596 = vmatprep.subr.mxu0 %v227
  %597 = vmatpush2.msra.mxu0 %v226
  %598 = vmatprep.subr.mxu0 %v221
  %599 = vmatpush2.msra.mxu0 %v220
  %600 = vmatprep.subr.mxu0 %v215
  %601 = vmatpush2.msra.mxu0 %v214
  %602 = vmatprep.subr.mxu0 %v209
  %603 = vmatpush2.msra.mxu0 %v208
  %604 = vmatprep.subr.mxu0 %v203
  %605 = vmatpush2.msra.mxu0 %v202
  %606 = vmatprep.subr.mxu0 %v197
  %607 = vmatpush2.msra.mxu0 %v196
  %608 = vmatprep.subr.mxu0 %v191
  %609 = vmatpush2.msra.mxu0 %v190
  %610 = vmatprep.subr.mxu0 %v185
  %611 = vmatpush2.msra.mxu0 %v184
  %612 = vmatprep.subr.mxu0 %v179
  %613 = vmatpush2.msra.mxu0 %v178
  %614 = vmatprep.subr.mxu0 %v173
  %615 = vmatpush2.msra.mxu0 %v172
  %616 = vmatprep.subr.mxu0 %v167
  %617 = vmatpush2.msra.mxu0 %v166
  %618 = vmatprep.subr.mxu0 %v161
  %619 = vmatpush2.msra.mxu0 %v160
  %620 = vmatprep.subr.mxu0 %v155
  %621 = vmatpush2.msra.mxu0 %v154
  %622 = vmatprep.subr.mxu0 %v149
  %623 = vmatpush2.msra.mxu0 %v148
  %624 = vmatprep.subr.mxu0 %v143
  %625 = vmatpush2.msra.mxu0 %v142
  %626 = vmatprep.subr.mxu0 %v137
  %627 = vmatpush2.msra.mxu0 %v136
  %628 = vmatprep.mubr.f32.mxu0 %v21
  %629 = vmatmul.mubr.f32.gmra.mxu0 %v20
  %v630 = vpop.f32.mrf.mxu0
  %v631 = vadd.f32 %v335, %v630
  %v632 = vpop.f32.mrf.mxu0
  %v633 = vadd.f32 %v335, %v632
  %634 = vmatprep.mubr.f32.mxu0 %v24
  %635 = vmatmul.mubr.f32.gmra.mxu0 %v23
  %v636 = vpop.f32.mrf.mxu0
  %v637 = vadd.f32 %v340, %v636
  %v638 = vpop.f32.mrf.mxu0
  %v639 = vadd.f32 %v340, %v638
  %640 = vmatprep.mubr.f32.mxu0 %v27
  %641 = vmatmul.mubr.f32.gmra.mxu0 %v26
  %v642 = vpop.f32.mrf.mxu0
  %v643 = vadd.f32 %v345, %v642
  %v644 = vpop.f32.mrf.mxu0
  %v645 = vadd.f32 %v345, %v644
  %646 = vmatprep.mubr.f32.mxu0 %v30
  %647 = vmatmul.mubr.f32.gmra.mxu0 %v29
  %v648 = vpop.f32.mrf.mxu0
  %v649 = vadd.f32 %v350, %v648
  %v650 = vpop.f32.mrf.mxu0
  %v651 = vadd.f32 %v350, %v650
  %652 = vmatprep.mubr.f32.mxu0 %v33
  %653 = vmatmul.mubr.f32.gmra.mxu0 %v32
  %v654 = vpop.f32.mrf.mxu0
  %v655 = vadd.f32 %v355, %v654
  %v656 = vpop.f32.mrf.mxu0
  %v657 = vadd.f32 %v355, %v656
  %658 = vmatprep.mubr.f32.mxu0 %v36
  %659 = vmatmul.mubr.f32.gmra.mxu0 %v35
  %v660 = vpop.f32.mrf.mxu0
  %v661 = vadd.f32 %v360, %v660
  %v662 = vpop.f32.mrf.mxu0
  %v663 = vadd.f32 %v360, %v662
  %664 = vdwg.mxu0
  %665 = vmatprep.subr.mxu0 %v323
  %666 = vmatpush1.msra.mxu0 %v322
  %667 = vmatprep.subr.mxu0 %v317
  %668 = vmatpush1.msra.mxu0 %v316
  %669 = vmatprep.subr.mxu0 %v311
  %670 = vmatpush1.msra.mxu0 %v310
  %671 = vmatprep.subr.mxu0 %v305
  %672 = vmatpush1.msra.mxu0 %v304
  %673 = vmatprep.subr.mxu0 %v299
  %674 = vmatpush1.msra.mxu0 %v298
  %675 = vmatprep.subr.mxu0 %v293
  %676 = vmatpush1.msra.mxu0 %v292
  %677 = vmatprep.subr.mxu0 %v287
  %678 = vmatpush1.msra.mxu0 %v286
  %679 = vmatprep.subr.mxu0 %v281
  %680 = vmatpush1.msra.mxu0 %v280
  %681 = vmatprep.subr.mxu0 %v275
  %682 = vmatpush1.msra.mxu0 %v274
  %683 = vmatprep.subr.mxu0 %v269
  %684 = vmatpush1.msra.mxu0 %v268
  %685 = vmatprep.subr.mxu0 %v263
  %686 = vmatpush1.msra.mxu0 %v262
  %687 = vmatprep.subr.mxu0 %v257
  %688 = vmatpush1.msra.mxu0 %v256
  %689 = vmatprep.subr.mxu0 %v251
  %690 = vmatpush1.msra.mxu0 %v250
  %691 = vmatprep.subr.mxu0 %v245
  %692 = vmatpush1.msra.mxu0 %v244
  %693 = vmatprep.subr.mxu0 %v239
  %694 = vmatpush1.msra.mxu0 %v238
  %695 = vmatprep.subr.mxu0 %v233
  %696 = vmatpush1.msra.mxu0 %v232
  %697 = vmatprep.subr.mxu0 0.0
  %698 = vmatpush2.msra.mxu0 0.0
  %699 = vmatprep.subr.mxu0 0.0
  %700 = vmatpush2.msra.mxu0 0.0
  %701 = vmatprep.subr.mxu0 0.0
  %702 = vmatpush2.msra.mxu0 0.0
  %703 = vmatprep.subr.mxu0 0.0
  %704 = vmatpush2.msra.mxu0 0.0
  %705 = vmatprep.subr.mxu0 0.0
  %706 = vmatpush2.msra.mxu0 0.0
  %707 = vmatprep.subr.mxu0 0.0
  %708 = vmatpush2.msra.mxu0 0.0
  %709 = vmatprep.subr.mxu0 0.0
  %710 = vmatpush2.msra.mxu0 0.0
  %711 = vmatprep.subr.mxu0 0.0
  %712 = vmatpush2.msra.mxu0 0.0
  %713 = vmatprep.subr.mxu0 0.0
  %714 = vmatpush2.msra.mxu0 0.0
  %715 = vmatprep.subr.mxu0 0.0
  %716 = vmatpush2.msra.mxu0 0.0
  %717 = vmatprep.subr.mxu0 0.0
  %718 = vmatpush2.msra.mxu0 0.0
  %719 = vmatprep.subr.mxu0 0.0
  %720 = vmatpush2.msra.mxu0 0.0
  %721 = vmatprep.subr.mxu0 0.0
  %722 = vmatpush2.msra.mxu0 0.0
  %723 = vmatprep.subr.mxu0 0.0
  %724 = vmatpush2.msra.mxu0 0.0
  %725 = vmatprep.subr.mxu0 0.0
  %726 = vmatpush2.msra.mxu0 0.0
  %727 = vmatprep.subr.mxu0 0.0
  %728 = vmatpush2.msra.mxu0 0.0
  %729 = vmatprep.mubr.f32.mxu0 0.0
  %730 = vmatmul.mubr.f32.gmra.mxu0 %v22
  %v731 = vpop.f32.mrf.mxu0
  %v732 = vadd.f32 %v631, %v731
  %v733 = vpop.f32.mrf.mxu0
  %v734 = vadd.f32 %v633, %v733
  %735 = vmatprep.mubr.f32.mxu0 0.0
  %736 = vmatmul.mubr.f32.gmra.mxu0 %v25
  %v737 = vpop.f32.mrf.mxu0
  %v738 = vadd.f32 %v637, %v737
  %v739 = vpop.f32.mrf.mxu0
  %v740 = vadd.f32 %v639, %v739
  %741 = vmatprep.mubr.f32.mxu0 0.0
  %742 = vmatmul.mubr.f32.gmra.mxu0 %v28
  %v743 = vpop.f32.mrf.mxu0
  %v744 = vadd.f32 %v643, %v743
  %v745 = vpop.f32.mrf.mxu0
  %v746 = vadd.f32 %v645, %v745
  %747 = vmatprep.mubr.f32.mxu0 0.0
  %748 = vmatmul.mubr.f32.gmra.mxu0 %v31
  %v749 = vpop.f32.mrf.mxu0
  %v750 = vadd.f32 %v649, %v749
  %v751 = vpop.f32.mrf.mxu0
  %v752 = vadd.f32 %v651, %v751
  %753 = vmatprep.mubr.f32.mxu0 0.0
  %754 = vmatmul.mubr.f32.gmra.mxu0 %v34
  %v755 = vpop.f32.mrf.mxu0
  %v756 = vadd.f32 %v655, %v755
  %v757 = vpop.f32.mrf.mxu0
  %v758 = vadd.f32 %v657, %v757
  %759 = vmatprep.mubr.f32.mxu0 0.0
  %760 = vmatmul.mubr.f32.gmra.mxu0 %v37
  %v761 = vpop.f32.mrf.mxu0
  %v762 = vadd.f32 %v661, %v761
  %v763 = vpop.f32.mrf.mxu0
  %v764 = vadd.f32 %v663, %v763
  %765 = vdwg.mxu0
  %766 = vmatprep.subr.mxu0 %v133
  %767 = vmatpush1.msra.mxu0 %v132
  %768 = vmatprep.subr.mxu0 %v127
  %769 = vmatpush1.msra.mxu0 %v126
  %770 = vmatprep.subr.mxu0 %v121
  %771 = vmatpush1.msra.mxu0 %v120
  %772 = vmatprep.subr.mxu0 %v115
  %773 = vmatpush1.msra.mxu0 %v114
  %774 = vmatprep.subr.mxu0 %v109
  %775 = vmatpush1.msra.mxu0 %v108
  %776 = vmatprep.subr.mxu0 %v103
  %777 = vmatpush1.msra.mxu0 %v102
  %778 = vmatprep.subr.mxu0 %v97
  %779 = vmatpush1.msra.mxu0 %v96
  %780 = vmatprep.subr.mxu0 %v91
  %781 = vmatpush1.msra.mxu0 %v90
  %782 = vmatprep.subr.mxu0 %v85
  %783 = vmatpush1.msra.mxu0 %v84
  %784 = vmatprep.subr.mxu0 %v79
  %785 = vmatpush1.msra.mxu0 %v78
  %786 = vmatprep.subr.mxu0 %v73
  %787 = vmatpush1.msra.mxu0 %v72
  %788 = vmatprep.subr.mxu0 %v67
  %789 = vmatpush1.msra.mxu0 %v66
  %790 = vmatprep.subr.mxu0 %v61
  %791 = vmatpush1.msra.mxu0 %v60
  %792 = vmatprep.subr.mxu0 %v55
  %793 = vmatpush1.msra.mxu0 %v54
  %794 = vmatprep.subr.mxu0 %v49
  %795 = vmatpush1.msra.mxu0 %v48
  %796 = vmatprep.subr.mxu0 %v43
  %797 = vmatpush1.msra.mxu0 %v42
  %798 = vmatprep.subr.mxu0 %v229
  %799 = vmatpush2.msra.mxu0 %v228
  %800 = vmatprep.subr.mxu0 %v223
  %801 = vmatpush2.msra.mxu0 %v222
  %802 = vmatprep.subr.mxu0 %v217
  %803 = vmatpush2.msra.mxu0 %v216
  %804 = vmatprep.subr.mxu0 %v211
  %805 = vmatpush2.msra.mxu0 %v210
  %806 = vmatprep.subr.mxu0 %v205
  %807 = vmatpush2.msra.mxu0 %v204
  %808 = vmatprep.subr.mxu0 %v199
  %809 = vmatpush2.msra.mxu0 %v198
  %810 = vmatprep.subr.mxu0 %v193
  %811 = vmatpush2.msra.mxu0 %v192
  %812 = vmatprep.subr.mxu0 %v187
  %813 = vmatpush2.msra.mxu0 %v186
  %814 = vmatprep.subr.mxu0 %v181
  %815 = vmatpush2.msra.mxu0 %v180
  %816 = vmatprep.subr.mxu0 %v175
  %817 = vmatpush2.msra.mxu0 %v174
  %818 = vmatprep.subr.mxu0 %v169
  %819 = vmatpush2.msra.mxu0 %v168
  %820 = vmatprep.subr.mxu0 %v163
  %821 = vmatpush2.msra.mxu0 %v162
  %822 = vmatprep.subr.mxu0 %v157
  %823 = vmatpush2.msra.mxu0 %v156
  %824 = vmatprep.subr.mxu0 %v151
  %825 = vmatpush2.msra.mxu0 %v150
  %826 = vmatprep.subr.mxu0 %v145
  %827 = vmatpush2.msra.mxu0 %v144
  %828 = vmatprep.subr.mxu0 %v139
  %829 = vmatpush2.msra.mxu0 %v138
  %830 = vmatprep.mubr.f32.mxu0 %v21
  %831 = vmatmul.mubr.f32.gmra.mxu0 %v20
  %v832 = vpop.f32.mrf.mxu0
  %v833 = vadd.f32 %v335, %v832
  %v834 = vpop.f32.mrf.mxu0
  %v835 = vadd.f32 %v335, %v834
  %836 = vmatprep.mubr.f32.mxu0 %v24
  %837 = vmatmul.mubr.f32.gmra.mxu0 %v23
  %v838 = vpop.f32.mrf.mxu0
  %v839 = vadd.f32 %v340, %v838
  %v840 = vpop.f32.mrf.mxu0
  %v841 = vadd.f32 %v340, %v840
  %842 = vmatprep.mubr.f32.mxu0 %v27
  %843 = vmatmul.mubr.f32.gmra.mxu0 %v26
  %v844 = vpop.f32.mrf.mxu0
  %v845 = vadd.f32 %v345, %v844
  %v846 = vpop.f32.mrf.mxu0
  %v847 = vadd.f32 %v345, %v846
  %848 = vmatprep.mubr.f32.mxu0 %v30
  %849 = vmatmul.mubr.f32.gmra.mxu0 %v29
  %v850 = vpop.f32.mrf.mxu0
  %v851 = vadd.f32 %v350, %v850
  %v852 = vpop.f32.mrf.mxu0
  %v853 = vadd.f32 %v350, %v852
  %854 = vmatprep.mubr.f32.mxu0 %v33
  %855 = vmatmul.mubr.f32.gmra.mxu0 %v32
  %v856 = vpop.f32.mrf.mxu0
  %v857 = vadd.f32 %v355, %v856
  %v858 = vpop.f32.mrf.mxu0
  %v859 = vadd.f32 %v355, %v858
  %860 = vmatprep.mubr.f32.mxu0 %v36
  %861 = vmatmul.mubr.f32.gmra.mxu0 %v35
  %v862 = vpop.f32.mrf.mxu0
  %v863 = vadd.f32 %v360, %v862
  %v864 = vpop.f32.mrf.mxu0
  %v865 = vadd.f32 %v360, %v864
  %866 = vdwg.mxu0
  %867 = vmatprep.subr.mxu0 %v325
  %868 = vmatpush1.msra.mxu0 %v324
  %869 = vmatprep.subr.mxu0 %v319
  %870 = vmatpush1.msra.mxu0 %v318
  %871 = vmatprep.subr.mxu0 %v313
  %872 = vmatpush1.msra.mxu0 %v312
  %873 = vmatprep.subr.mxu0 %v307
  %874 = vmatpush1.msra.mxu0 %v306
  %875 = vmatprep.subr.mxu0 %v301
  %876 = vmatpush1.msra.mxu0 %v300
  %877 = vmatprep.subr.mxu0 %v295
  %878 = vmatpush1.msra.mxu0 %v294
  %879 = vmatprep.subr.mxu0 %v289
  %880 = vmatpush1.msra.mxu0 %v288
  %881 = vmatprep.subr.mxu0 %v283
  %882 = vmatpush1.msra.mxu0 %v282
  %883 = vmatprep.subr.mxu0 %v277
  %884 = vmatpush1.msra.mxu0 %v276
  %885 = vmatprep.subr.mxu0 %v271
  %886 = vmatpush1.msra.mxu0 %v270
  %887 = vmatprep.subr.mxu0 %v265
  %888 = vmatpush1.msra.mxu0 %v264
  %889 = vmatprep.subr.mxu0 %v259
  %890 = vmatpush1.msra.mxu0 %v258
  %891 = vmatprep.subr.mxu0 %v253
  %892 = vmatpush1.msra.mxu0 %v252
  %893 = vmatprep.subr.mxu0 %v247
  %894 = vmatpush1.msra.mxu0 %v246
  %895 = vmatprep.subr.mxu0 %v241
  %896 = vmatpush1.msra.mxu0 %v240
  %897 = vmatprep.subr.mxu0 %v235
  %898 = vmatpush1.msra.mxu0 %v234
  %899 = vmatprep.subr.mxu0 0.0
  %900 = vmatpush2.msra.mxu0 0.0
  %901 = vmatprep.subr.mxu0 0.0
  %902 = vmatpush2.msra.mxu0 0.0
  %903 = vmatprep.subr.mxu0 0.0
  %904 = vmatpush2.msra.mxu0 0.0
  %905 = vmatprep.subr.mxu0 0.0
  %906 = vmatpush2.msra.mxu0 0.0
  %907 = vmatprep.subr.mxu0 0.0
  %908 = vmatpush2.msra.mxu0 0.0
  %909 = vmatprep.subr.mxu0 0.0
  %910 = vmatpush2.msra.mxu0 0.0
  %911 = vmatprep.subr.mxu0 0.0
  %912 = vmatpush2.msra.mxu0 0.0
  %913 = vmatprep.subr.mxu0 0.0
  %914 = vmatpush2.msra.mxu0 0.0
  %915 = vmatprep.subr.mxu0 0.0
  %916 = vmatpush2.msra.mxu0 0.0
  %917 = vmatprep.subr.mxu0 0.0
  %918 = vmatpush2.msra.mxu0 0.0
  %919 = vmatprep.subr.mxu0 0.0
  %920 = vmatpush2.msra.mxu0 0.0
  %921 = vmatprep.subr.mxu0 0.0
  %922 = vmatpush2.msra.mxu0 0.0
  %923 = vmatprep.subr.mxu0 0.0
  %924 = vmatpush2.msra.mxu0 0.0
  %925 = vmatprep.subr.mxu0 0.0
  %926 = vmatpush2.msra.mxu0 0.0
  %927 = vmatprep.subr.mxu0 0.0
  %928 = vmatpush2.msra.mxu0 0.0
  %929 = vmatprep.subr.mxu0 0.0
  %930 = vmatpush2.msra.mxu0 0.0
  %931 = vmatprep.mubr.f32.mxu0 0.0
  %932 = vmatmul.mubr.f32.gmra.mxu0 %v22
  %v933 = vpop.f32.mrf.mxu0
  %v934 = vadd.f32 %v833, %v933
  %v935 = vpop.f32.mrf.mxu0
  %v936 = vadd.f32 %v835, %v935
  %937 = vmatprep.mubr.f32.mxu0 0.0
  %938 = vmatmul.mubr.f32.gmra.mxu0 %v25
  %v939 = vpop.f32.mrf.mxu0
  %v940 = vadd.f32 %v839, %v939
  %v941 = vpop.f32.mrf.mxu0
  %v942 = vadd.f32 %v841, %v941
  %943 = vmatprep.mubr.f32.mxu0 0.0
  %944 = vmatmul.mubr.f32.gmra.mxu0 %v28
  %v945 = vpop.f32.mrf.mxu0
  %v946 = vadd.f32 %v845, %v945
  %v947 = vpop.f32.mrf.mxu0
  %v948 = vadd.f32 %v847, %v947
  %949 = vmatprep.mubr.f32.mxu0 0.0
  %950 = vmatmul.mubr.f32.gmra.mxu0 %v31
  %v951 = vpop.f32.mrf.mxu0
  %v952 = vadd.f32 %v851, %v951
  %v953 = vpop.f32.mrf.mxu0
  %v954 = vadd.f32 %v853, %v953
  %955 = vmatprep.mubr.f32.mxu0 0.0
  %956 = vmatmul.mubr.f32.gmra.mxu0 %v34
  %v957 = vpop.f32.mrf.mxu0
  %v958 = vadd.f32 %v857, %v957
  %v959 = vpop.f32.mrf.mxu0
  %v960 = vadd.f32 %v859, %v959
  %961 = vmatprep.mubr.f32.mxu0 0.0
  %962 = vmatmul.mubr.f32.gmra.mxu0 %v37
  %v963 = vpop.f32.mrf.mxu0
  %v964 = vadd.f32 %v863, %v963
  %v965 = vpop.f32.mrf.mxu0
  %v966 = vadd.f32 %v865, %v965
  %967 = vdwg.mxu0
  %v968 = vmax.f32 %v530, 0.0
  %v969 = vmax.f32 %v532, 0.0
  %v970 = vmax.f32 %v732, 0.0
  %v971 = vmax.f32 %v734, 0.0
  %v972 = vmax.f32 %v934, 0.0
  %v973 = vmax.f32 %v936, 0.0
  %v974 = vmax.f32 %v536, 0.0
  %v975 = vmax.f32 %v538, 0.0
  %v976 = vmax.f32 %v738, 0.0
  %v977 = vmax.f32 %v740, 0.0
  %v978 = vmax.f32 %v940, 0.0
  %v979 = vmax.f32 %v942, 0.0
  %v980 = vmax.f32 %v542, 0.0
  %v981 = vmax.f32 %v544, 0.0
  %v982 = vmax.f32 %v744, 0.0
  %v983 = vmax.f32 %v746, 0.0
  %v984 = vmax.f32 %v946, 0.0
  %v985 = vmax.f32 %v948, 0.0
  %v986 = vmax.f32 %v548, 0.0
  %v987 = vmax.f32 %v550, 0.0
  %v988 = vmax.f32 %v750, 0.0
  %v989 = vmax.f32 %v752, 0.0
  %v990 = vmax.f32 %v952, 0.0
  %v991 = vmax.f32 %v954, 0.0
  %v992 = vmax.f32 %v554, 0.0
  %v993 = vmax.f32 %v556, 0.0
  %v994 = vmax.f32 %v756, 0.0
  %v995 = vmax.f32 %v758, 0.0
  %v996 = vmax.f32 %v958, 0.0
  %v997 = vmax.f32 %v960, 0.0
  %v998 = vmax.f32 %v560, 0.0
  %v999 = vmax.f32 %v562, 0.0
  %v1000 = vmax.f32 %v762, 0.0
  %v1001 = vmax.f32 %v764, 0.0
  %v1002 = vmax.f32 %v964, 0.0
  %v1003 = vmax.f32 %v966, 0.0
  %v1004 = vld [vmem:[%s3] sm:$0xff]
  %v1005 = vld [vmem:[%s3 + $0x8] sm:$0xff]
  %v1006 = vld [vmem:[%s3 + $0x10] sm:$0xff]
  %v1007 = vld [vmem:[%s3 + $0x18] sm:$0xff]
  %v1008 = vld [vmem:[%s3 + $0x20] sm:$0xff]
  %v1009 = vld [vmem:[%s3 + $0x28] sm:$0xff]
  %v1010 = vld [vmem:[%s3 + $0x30] sm:$0xff]
  %v1011 = vld [vmem:[%s3 + $0x38] sm:$0xff]
  %v1012 = vld [vmem:[%s3 + $0x40] sm:$0xff]
  %v1013 = vld [vmem:[%s3 + $0x48] sm:$0xff]
  %v1014 = vld [vmem:[%s3 + $0x50] sm:$0xff]
  %v1015 = vld [vmem:[%s3 + $0x58] sm:$0xff]
  %v1016 = vld [vmem:[%s3 + $0x60] sm:$0xff]
  %v1017 = vld [vmem:[%s3 + $0x68] sm:$0xff]
  %v1018 = vld [vmem:[%s3 + $0x70] sm:$0xff]
  %v1019 = vld [vmem:[%s3 + $0x78] sm:$0xff]
  %v1020 = vld [vmem:[%s3 + $0x80] sm:$0xff]
  %v1021 = vld [vmem:[%s3 + $0x88] sm:$0xff]
  %v1022 = vld [vmem:[%s3 + $0x90] sm:$0xff]
  %v1023 = vld [vmem:[%s3 + $0x98] sm:$0xff]
  %v1024 = vld [vmem:[%s3 + $0xa0] sm:$0xff]
  %v1025 = vld [vmem:[%s3 + $0xa8] sm:$0xff]
  %v1026 = vld [vmem:[%s3 + $0xb0] sm:$0xff]
  %v1027 = vld [vmem:[%s3 + $0xb8] sm:$0xff]
  %v1028 = vld [vmem:[%s4] sm:$0xff]
  %v1029 = vld [vmem:[%s4 + $0x8] sm:$0xff]
  %v1030 = vld [vmem:[%s4 + $0x10] sm:$0xff]
  %v1031 = vld [vmem:[%s4 + $0x18] sm:$0xff]
  %v1032 = vld [vmem:[%s4 + $0x20] sm:$0xff]
  %v1033 = vld [vmem:[%s4 + $0x28] sm:$0xff]
  %v1034 = vld [vmem:[%s4 + $0x30] sm:$0xff]
  %v1035 = vld [vmem:[%s4 + $0x38] sm:$0xff]
  %v1036 = vld [vmem:[%s4 + $0x40] sm:$0xff]
  %v1037 = vld [vmem:[%s4 + $0x48] sm:$0xff]
  %v1038 = vld [vmem:[%s4 + $0x50] sm:$0xff]
  %v1039 = vld [vmem:[%s4 + $0x58] sm:$0xff]
  %v1040 = vld [vmem:[%s4 + $0x60] sm:$0xff]
  %v1041 = vld [vmem:[%s4 + $0x68] sm:$0xff]
  %v1042 = vld [vmem:[%s4 + $0x70] sm:$0xff]
  %v1043 = vld [vmem:[%s4 + $0x78] sm:$0xff]
  %v1044 = vld [vmem:[%s4 + $0x80] sm:$0xff]
  %v1045 = vld [vmem:[%s4 + $0x88] sm:$0xff]
  %v1046 = vld [vmem:[%s4 + $0x90] sm:$0xff]
  %v1047 = vld [vmem:[%s4 + $0x98] sm:$0xff]
  %v1048 = vld [vmem:[%s4 + $0xa0] sm:$0xff]
  %v1049 = vld [vmem:[%s4 + $0xa8] sm:$0xff]
  %v1050 = vld [vmem:[%s4 + $0xb0] sm:$0xff]
  %v1051 = vld [vmem:[%s4 + $0xb8] sm:$0xff]
  %1053 = vset.pattern.permute.xlu0 0
  %1054 = vperm.xlu0 %1053, %v1028
  %v1055 = vpop.permute.xlu0 %1054
  %1058 = vset.pattern.permute.xlu0 0
  %1059 = vperm.xlu0 %1058, %v1029
  %v1060 = vpop.permute.xlu0 %1059
  %1063 = vset.pattern.permute.xlu0 0
  %1064 = vperm.xlu0 %1063, %v1030
  %v1065 = vpop.permute.xlu0 %1064
  %1068 = vset.pattern.permute.xlu0 0
  %1069 = vperm.xlu0 %1068, %v1031
  %v1070 = vpop.permute.xlu0 %1069
  %1073 = vset.pattern.permute.xlu0 0
  %1074 = vperm.xlu0 %1073, %v1032
  %v1075 = vpop.permute.xlu0 %1074
  %1078 = vset.pattern.permute.xlu0 0
  %1079 = vperm.xlu0 %1078, %v1033
  %v1080 = vpop.permute.xlu0 %1079
  %1083 = vset.pattern.permute.xlu0 0
  %1084 = vperm.xlu0 %1083, %v1034
  %v1085 = vpop.permute.xlu0 %1084
  %1088 = vset.pattern.permute.xlu0 0
  %1089 = vperm.xlu0 %1088, %v1035
  %v1090 = vpop.permute.xlu0 %1089
  %1093 = vset.pattern.permute.xlu0 0
  %1094 = vperm.xlu0 %1093, %v1036
  %v1095 = vpop.permute.xlu0 %1094
  %1098 = vset.pattern.permute.xlu0 0
  %1099 = vperm.xlu0 %1098, %v1037
  %v1100 = vpop.permute.xlu0 %1099
  %1103 = vset.pattern.permute.xlu0 0
  %1104 = vperm.xlu0 %1103, %v1038
  %v1105 = vpop.permute.xlu0 %1104
  %1108 = vset.pattern.permute.xlu0 0
  %1109 = vperm.xlu0 %1108, %v1039
  %v1110 = vpop.permute.xlu0 %1109
  %1113 = vset.pattern.permute.xlu0 0
  %1114 = vperm.xlu0 %1113, %v1040
  %v1115 = vpop.permute.xlu0 %1114
  %1118 = vset.pattern.permute.xlu0 0
  %1119 = vperm.xlu0 %1118, %v1041
  %v1120 = vpop.permute.xlu0 %1119
  %1123 = vset.pattern.permute.xlu0 0
  %1124 = vperm.xlu0 %1123, %v1042
  %v1125 = vpop.permute.xlu0 %1124
  %1128 = vset.pattern.permute.xlu0 0
  %1129 = vperm.xlu0 %1128, %v1043
  %v1130 = vpop.permute.xlu0 %1129
  %1133 = vset.pattern.permute.xlu0 0
  %1134 = vperm.xlu0 %1133, %v1044
  %v1135 = vpop.permute.xlu0 %1134
  %1138 = vset.pattern.permute.xlu0 0
  %1139 = vperm.xlu0 %1138, %v1045
  %v1140 = vpop.permute.xlu0 %1139
  %1143 = vset.pattern.permute.xlu0 0
  %1144 = vperm.xlu0 %1143, %v1046
  %v1145 = vpop.permute.xlu0 %1144
  %1148 = vset.pattern.permute.xlu0 0
  %1149 = vperm.xlu0 %1148, %v1047
  %v1150 = vpop.permute.xlu0 %1149
  %1153 = vset.pattern.permute.xlu0 0
  %1154 = vperm.xlu0 %1153, %v1048
  %v1155 = vpop.permute.xlu0 %1154
  %1158 = vset.pattern.permute.xlu0 0
  %1159 = vperm.xlu0 %1158, %v1049
  %v1160 = vpop.permute.xlu0 %1159
  %1163 = vset.pattern.permute.xlu0 0
  %1164 = vperm.xlu0 %1163, %v1050
  %v1165 = vpop.permute.xlu0 %1164
  %1168 = vset.pattern.permute.xlu0 0
  %1169 = vperm.xlu0 %1168, %v1051
  %v1170 = vpop.permute.xlu0 %1169
  %vm1172 = vcmask 392192
  %v1174 = vsel %vm1172, %v1004, 0
  %v1177 = vsel %vm1172, %v1005, 0
  %v1180 = vsel %vm1172, %v1006, 0
  %v1183 = vsel %vm1172, %v1007, 0
  %v1186 = vsel %vm1172, %v1008, 0
  %v1189 = vsel %vm1172, %v1009, 0
  %v1192 = vsel %vm1172, %v1010, 0
  %v1195 = vsel %vm1172, %v1011, 0
  %v1198 = vsel %vm1172, %v1012, 0
  %v1201 = vsel %vm1172, %v1013, 0
  %v1204 = vsel %vm1172, %v1014, 0
  %v1207 = vsel %vm1172, %v1015, 0
  %v1210 = vsel %vm1172, %v1016, 0
  %v1213 = vsel %vm1172, %v1017, 0
  %v1216 = vsel %vm1172, %v1018, 0
  %v1219 = vsel %vm1172, %v1019, 0
  %v1222 = vsel %vm1172, %v1020, 0
  %v1225 = vsel %vm1172, %v1021, 0
  %v1228 = vsel %vm1172, %v1022, 0
  %v1231 = vsel %vm1172, %v1023, 0
  %v1234 = vsel %vm1172, %v1024, 0
  %v1237 = vsel %vm1172, %v1025, 0
  %v1240 = vsel %vm1172, %v1026, 0
  %v1243 = vsel %vm1172, %v1027, 0
  %1245 = vmatprep.subr.mxu0 0.0
  %1246 = vmatpush1.msra.mxu0 0.0
  %1247 = vmatprep.subr.mxu0 0.0
  %1248 = vmatpush1.msra.mxu0 0.0
  %1249 = vmatprep.subr.mxu0 0.0
  %1250 = vmatpush1.msra.mxu0 0.0
  %1251 = vmatprep.subr.mxu0 0.0
  %1252 = vmatpush1.msra.mxu0 0.0
  %1253 = vmatprep.subr.mxu0 0.0
  %1254 = vmatpush1.msra.mxu0 0.0
  %1255 = vmatprep.subr.mxu0 0.0
  %1256 = vmatpush1.msra.mxu0 0.0
  %1257 = vmatprep.subr.mxu0 0.0
  %1258 = vmatpush1.msra.mxu0 0.0
  %1259 = vmatprep.subr.mxu0 0.0
  %1260 = vmatpush1.msra.mxu0 0.0
  %1261 = vmatprep.subr.mxu0 0.0
  %1262 = vmatpush1.msra.mxu0 0.0
  %1263 = vmatprep.subr.mxu0 0.0
  %1264 = vmatpush1.msra.mxu0 0.0
  %1265 = vmatprep.subr.mxu0 %v999
  %1266 = vmatpush1.msra.mxu0 %v998
  %1267 = vmatprep.subr.mxu0 %v993
  %1268 = vmatpush1.msra.mxu0 %v992
  %1269 = vmatprep.subr.mxu0 %v987
  %1270 = vmatpush1.msra.mxu0 %v986
  %1271 = vmatprep.subr.mxu0 %v981
  %1272 = vmatpush1.msra.mxu0 %v980
  %1273 = vmatprep.subr.mxu0 %v975
  %1274 = vmatpush1.msra.mxu0 %v974
  %1275 = vmatprep.subr.mxu0 %v969
  %1276 = vmatpush1.msra.mxu0 %v968
  %1277 = vmatprep.subr.mxu0 0.0
  %1278 = vmatpush2.msra.mxu0 0.0
  %1279 = vmatprep.subr.mxu0 0.0
  %1280 = vmatpush2.msra.mxu0 0.0
  %1281 = vmatprep.subr.mxu0 0.0
  %1282 = vmatpush2.msra.mxu0 0.0
  %1283 = vmatprep.subr.mxu0 0.0
  %1284 = vmatpush2.msra.mxu0 0.0
  %1285 = vmatprep.subr.mxu0 0.0
  %1286 = vmatpush2.msra.mxu0 0.0
  %1287 = vmatprep.subr.mxu0 0.0
  %1288 = vmatpush2.msra.mxu0 0.0
  %1289 = vmatprep.subr.mxu0 0.0
  %1290 = vmatpush2.msra.mxu0 0.0
  %1291 = vmatprep.subr.mxu0 0.0
  %1292 = vmatpush2.msra.mxu0 0.0
  %1293 = vmatprep.subr.mxu0 0.0
  %1294 = vmatpush2.msra.mxu0 0.0
  %1295 = vmatprep.subr.mxu0 0.0
  %1296 = vmatpush2.msra.mxu0 0.0
  %1297 = vmatprep.subr.mxu0 0.0
  %1298 = vmatpush2.msra.mxu0 0.0
  %1299 = vmatprep.subr.mxu0 0.0
  %1300 = vmatpush2.msra.mxu0 0.0
  %1301 = vmatprep.subr.mxu0 0.0
  %1302 = vmatpush2.msra.mxu0 0.0
  %1303 = vmatprep.subr.mxu0 0.0
  %1304 = vmatpush2.msra.mxu0 0.0
  %1305 = vmatprep.subr.mxu0 0.0
  %1306 = vmatpush2.msra.mxu0 0.0
  %1307 = vmatprep.subr.mxu0 0.0
  %1308 = vmatpush2.msra.mxu0 0.0
  %1309 = vmatprep.mubr.f32.mxu0 0.0
  %1310 = vmatmul.mubr.f32.gmra.mxu0 %v1174
  %v1311 = vpop.f32.mrf.mxu0
  %v1312 = vadd.f32 %v1055, %v1311
  %v1313 = vpop.f32.mrf.mxu0
  %v1314 = vadd.f32 %v1055, %v1313
  %1315 = vmatprep.mubr.f32.mxu0 0.0
  %1316 = vmatmul.mubr.f32.gmra.mxu0 %v1177
  %v1317 = vpop.f32.mrf.mxu0
  %v1318 = vadd.f32 %v1060, %v1317
  %v1319 = vpop.f32.mrf.mxu0
  %v1320 = vadd.f32 %v1060, %v1319
  %1321 = vmatprep.mubr.f32.mxu0 0.0
  %1322 = vmatmul.mubr.f32.gmra.mxu0 %v1180
  %v1323 = vpop.f32.mrf.mxu0
  %v1324 = vadd.f32 %v1065, %v1323
  %v1325 = vpop.f32.mrf.mxu0
  %v1326 = vadd.f32 %v1065, %v1325
  %1327 = vmatprep.mubr.f32.mxu0 0.0
  %1328 = vmatmul.mubr.f32.gmra.mxu0 %v1183
  %v1329 = vpop.f32.mrf.mxu0
  %v1330 = vadd.f32 %v1070, %v1329
  %v1331 = vpop.f32.mrf.mxu0
  %v1332 = vadd.f32 %v1070, %v1331
  %1333 = vmatprep.mubr.f32.mxu0 0.0
  %1334 = vmatmul.mubr.f32.gmra.mxu0 %v1186
  %v1335 = vpop.f32.mrf.mxu0
  %v1336 = vadd.f32 %v1075, %v1335
  %v1337 = vpop.f32.mrf.mxu0
  %v1338 = vadd.f32 %v1075, %v1337
  %1339 = vmatprep.mubr.f32.mxu0 0.0
  %1340 = vmatmul.mubr.f32.gmra.mxu0 %v1189
  %v1341 = vpop.f32.mrf.mxu0
  %v1342 = vadd.f32 %v1080, %v1341
  %v1343 = vpop.f32.mrf.mxu0
  %v1344 = vadd.f32 %v1080, %v1343
  %1345 = vmatprep.mubr.f32.mxu0 0.0
  %1346 = vmatmul.mubr.f32.gmra.mxu0 %v1192
  %v1347 = vpop.f32.mrf.mxu0
  %v1348 = vadd.f32 %v1085, %v1347
  %v1349 = vpop.f32.mrf.mxu0
  %v1350 = vadd.f32 %v1085, %v1349
  %1351 = vmatprep.mubr.f32.mxu0 0.0
  %1352 = vmatmul.mubr.f32.gmra.mxu0 %v1195
  %v1353 = vpop.f32.mrf.mxu0
  %v1354 = vadd.f32 %v1090, %v1353
  %v1355 = vpop.f32.mrf.mxu0
  %v1356 = vadd.f32 %v1090, %v1355
  %1357 = vmatprep.mubr.f32.mxu0 0.0
  %1358 = vmatmul.mubr.f32.gmra.mxu0 %v1198
  %v1359 = vpop.f32.mrf.mxu0
  %v1360 = vadd.f32 %v1095, %v1359
  %v1361 = vpop.f32.mrf.mxu0
  %v1362 = vadd.f32 %v1095, %v1361
  %1363 = vmatprep.mubr.f32.mxu0 0.0
  %1364 = vmatmul.mubr.f32.gmra.mxu0 %v1201
  %v1365 = vpop.f32.mrf.mxu0
  %v1366 = vadd.f32 %v1100, %v1365
  %v1367 = vpop.f32.mrf.mxu0
  %v1368 = vadd.f32 %v1100, %v1367
  %1369 = vmatprep.mubr.f32.mxu0 0.0
  %1370 = vmatmul.mubr.f32.gmra.mxu0 %v1204
  %v1371 = vpop.f32.mrf.mxu0
  %v1372 = vadd.f32 %v1105, %v1371
  %v1373 = vpop.f32.mrf.mxu0
  %v1374 = vadd.f32 %v1105, %v1373
  %1375 = vmatprep.mubr.f32.mxu0 0.0
  %1376 = vmatmul.mubr.f32.gmra.mxu0 %v1207
  %v1377 = vpop.f32.mrf.mxu0
  %v1378 = vadd.f32 %v1110, %v1377
  %v1379 = vpop.f32.mrf.mxu0
  %v1380 = vadd.f32 %v1110, %v1379
  %1381 = vmatprep.mubr.f32.mxu0 0.0
  %1382 = vmatmul.mubr.f32.gmra.mxu0 %v1210
  %v1383 = vpop.f32.mrf.mxu0
  %v1384 = vadd.f32 %v1115, %v1383
  %v1385 = vpop.f32.mrf.mxu0
  %v1386 = vadd.f32 %v1115, %v1385
  %1387 = vmatprep.mubr.f32.mxu0 0.0
  %1388 = vmatmul.mubr.f32.gmra.mxu0 %v1213
  %v1389 = vpop.f32.mrf.mxu0
  %v1390 = vadd.f32 %v1120, %v1389
  %v1391 = vpop.f32.mrf.mxu0
  %v1392 = vadd.f32 %v1120, %v1391
  %1393 = vmatprep.mubr.f32.mxu0 0.0
  %1394 = vmatmul.mubr.f32.gmra.mxu0 %v1216
  %v1395 = vpop.f32.mrf.mxu0
  %v1396 = vadd.f32 %v1125, %v1395
  %v1397 = vpop.f32.mrf.mxu0
  %v1398 = vadd.f32 %v1125, %v1397
  %1399 = vmatprep.mubr.f32.mxu0 0.0
  %1400 = vmatmul.mubr.f32.gmra.mxu0 %v1219
  %v1401 = vpop.f32.mrf.mxu0
  %v1402 = vadd.f32 %v1130, %v1401
  %v1403 = vpop.f32.mrf.mxu0
  %v1404 = vadd.f32 %v1130, %v1403
  %1405 = vmatprep.mubr.f32.mxu0 0.0
  %1406 = vmatmul.mubr.f32.gmra.mxu0 %v1222
  %v1407 = vpop.f32.mrf.mxu0
  %v1408 = vadd.f32 %v1135, %v1407
  %v1409 = vpop.f32.mrf.mxu0
  %v1410 = vadd.f32 %v1135, %v1409
  %1411 = vmatprep.mubr.f32.mxu0 0.0
  %1412 = vmatmul.mubr.f32.gmra.mxu0 %v1225
  %v1413 = vpop.f32.mrf.mxu0
  %v1414 = vadd.f32 %v1140, %v1413
  %v1415 = vpop.f32.mrf.mxu0
  %v1416 = vadd.f32 %v1140, %v1415
  %1417 = vmatprep.mubr.f32.mxu0 0.0
  %1418 = vmatmul.mubr.f32.gmra.mxu0 %v1228
  %v1419 = vpop.f32.mrf.mxu0
  %v1420 = vadd.f32 %v1145, %v1419
  %v1421 = vpop.f32.mrf.mxu0
  %v1422 = vadd.f32 %v1145, %v1421
  %1423 = vmatprep.mubr.f32.mxu0 0.0
  %1424 = vmatmul.mubr.f32.gmra.mxu0 %v1231
  %v1425 = vpop.f32.mrf.mxu0
  %v1426 = vadd.f32 %v1150, %v1425
  %v1427 = vpop.f32.mrf.mxu0
  %v1428 = vadd.f32 %v1150, %v1427
  %1429 = vmatprep.mubr.f32.mxu0 0.0
  %1430 = vmatmul.mubr.f32.gmra.mxu0 %v1234
  %v1431 = vpop.f32.mrf.mxu0
  %v1432 = vadd.f32 %v1155, %v1431
  %v1433 = vpop.f32.mrf.mxu0
  %v1434 = vadd.f32 %v1155, %v1433
  %1435 = vmatprep.mubr.f32.mxu0 0.0
  %1436 = vmatmul.mubr.f32.gmra.mxu0 %v1237
  %v1437 = vpop.f32.mrf.mxu0
  %v1438 = vadd.f32 %v1160, %v1437
  %v1439 = vpop.f32.mrf.mxu0
  %v1440 = vadd.f32 %v1160, %v1439
  %1441 = vmatprep.mubr.f32.mxu0 0.0
  %1442 = vmatmul.mubr.f32.gmra.mxu0 %v1240
  %v1443 = vpop.f32.mrf.mxu0
  %v1444 = vadd.f32 %v1165, %v1443
  %v1445 = vpop.f32.mrf.mxu0
  %v1446 = vadd.f32 %v1165, %v1445
  %1447 = vmatprep.mubr.f32.mxu0 0.0
  %1448 = vmatmul.mubr.f32.gmra.mxu0 %v1243
  %v1449 = vpop.f32.mrf.mxu0
  %v1450 = vadd.f32 %v1170, %v1449
  %v1451 = vpop.f32.mrf.mxu0
  %v1452 = vadd.f32 %v1170, %v1451
  %1453 = vdwg.mxu0
  %1454 = vmatprep.subr.mxu0 0.0
  %1455 = vmatpush1.msra.mxu0 0.0
  %1456 = vmatprep.subr.mxu0 0.0
  %1457 = vmatpush1.msra.mxu0 0.0
  %1458 = vmatprep.subr.mxu0 0.0
  %1459 = vmatpush1.msra.mxu0 0.0
  %1460 = vmatprep.subr.mxu0 0.0
  %1461 = vmatpush1.msra.mxu0 0.0
  %1462 = vmatprep.subr.mxu0 0.0
  %1463 = vmatpush1.msra.mxu0 0.0
  %1464 = vmatprep.subr.mxu0 0.0
  %1465 = vmatpush1.msra.mxu0 0.0
  %1466 = vmatprep.subr.mxu0 0.0
  %1467 = vmatpush1.msra.mxu0 0.0
  %1468 = vmatprep.subr.mxu0 0.0
  %1469 = vmatpush1.msra.mxu0 0.0
  %1470 = vmatprep.subr.mxu0 0.0
  %1471 = vmatpush1.msra.mxu0 0.0
  %1472 = vmatprep.subr.mxu0 0.0
  %1473 = vmatpush1.msra.mxu0 0.0
  %1474 = vmatprep.subr.mxu0 %v1001
  %1475 = vmatpush1.msra.mxu0 %v1000
  %1476 = vmatprep.subr.mxu0 %v995
  %1477 = vmatpush1.msra.mxu0 %v994
  %1478 = vmatprep.subr.mxu0 %v989
  %1479 = vmatpush1.msra.mxu0 %v988
  %1480 = vmatprep.subr.mxu0 %v983
  %1481 = vmatpush1.msra.mxu0 %v982
  %1482 = vmatprep.subr.mxu0 %v977
  %1483 = vmatpush1.msra.mxu0 %v976
  %1484 = vmatprep.subr.mxu0 %v971
  %1485 = vmatpush1.msra.mxu0 %v970
  %1486 = vmatprep.subr.mxu0 0.0
  %1487 = vmatpush2.msra.mxu0 0.0
  %1488 = vmatprep.subr.mxu0 0.0
  %1489 = vmatpush2.msra.mxu0 0.0
  %1490 = vmatprep.subr.mxu0 0.0
  %1491 = vmatpush2.msra.mxu0 0.0
  %1492 = vmatprep.subr.mxu0 0.0
  %1493 = vmatpush2.msra.mxu0 0.0
  %1494 = vmatprep.subr.mxu0 0.0
  %1495 = vmatpush2.msra.mxu0 0.0
  %1496 = vmatprep.subr.mxu0 0.0
  %1497 = vmatpush2.msra.mxu0 0.0
  %1498 = vmatprep.subr.mxu0 0.0
  %1499 = vmatpush2.msra.mxu0 0.0
  %1500 = vmatprep.subr.mxu0 0.0
  %1501 = vmatpush2.msra.mxu0 0.0
  %1502 = vmatprep.subr.mxu0 0.0
  %1503 = vmatpush2.msra.mxu0 0.0
  %1504 = vmatprep.subr.mxu0 0.0
  %1505 = vmatpush2.msra.mxu0 0.0
  %1506 = vmatprep.subr.mxu0 0.0
  %1507 = vmatpush2.msra.mxu0 0.0
  %1508 = vmatprep.subr.mxu0 0.0
  %1509 = vmatpush2.msra.mxu0 0.0
  %1510 = vmatprep.subr.mxu0 0.0
  %1511 = vmatpush2.msra.mxu0 0.0
  %1512 = vmatprep.subr.mxu0 0.0
  %1513 = vmatpush2.msra.mxu0 0.0
  %1514 = vmatprep.subr.mxu0 0.0
  %1515 = vmatpush2.msra.mxu0 0.0
  %1516 = vmatprep.subr.mxu0 0.0
  %1517 = vmatpush2.msra.mxu0 0.0
  %1518 = vmatprep.mubr.f32.mxu0 0.0
  %1519 = vmatmul.mubr.f32.gmra.mxu0 %v1174
  %v1520 = vpop.f32.mrf.mxu0
  %v1521 = vadd.f32 %v1055, %v1520
  %v1522 = vpop.f32.mrf.mxu0
  %v1523 = vadd.f32 %v1055, %v1522
  %1524 = vmatprep.mubr.f32.mxu0 0.0
  %1525 = vmatmul.mubr.f32.gmra.mxu0 %v1177
  %v1526 = vpop.f32.mrf.mxu0
  %v1527 = vadd.f32 %v1060, %v1526
  %v1528 = vpop.f32.mrf.mxu0
  %v1529 = vadd.f32 %v1060, %v1528
  %1530 = vmatprep.mubr.f32.mxu0 0.0
  %1531 = vmatmul.mubr.f32.gmra.mxu0 %v1180
  %v1532 = vpop.f32.mrf.mxu0
  %v1533 = vadd.f32 %v1065, %v1532
  %v1534 = vpop.f32.mrf.mxu0
  %v1535 = vadd.f32 %v1065, %v1534
  %1536 = vmatprep.mubr.f32.mxu0 0.0
  %1537 = vmatmul.mubr.f32.gmra.mxu0 %v1183
  %v1538 = vpop.f32.mrf.mxu0
  %v1539 = vadd.f32 %v1070, %v1538
  %v1540 = vpop.f32.mrf.mxu0
  %v1541 = vadd.f32 %v1070, %v1540
  %1542 = vmatprep.mubr.f32.mxu0 0.0
  %1543 = vmatmul.mubr.f32.gmra.mxu0 %v1186
  %v1544 = vpop.f32.mrf.mxu0
  %v1545 = vadd.f32 %v1075, %v1544
  %v1546 = vpop.f32.mrf.mxu0
  %v1547 = vadd.f32 %v1075, %v1546
  %1548 = vmatprep.mubr.f32.mxu0 0.0
  %1549 = vmatmul.mubr.f32.gmra.mxu0 %v1189
  %v1550 = vpop.f32.mrf.mxu0
  %v1551 = vadd.f32 %v1080, %v1550
  %v1552 = vpop.f32.mrf.mxu0
  %v1553 = vadd.f32 %v1080, %v1552
  %1554 = vmatprep.mubr.f32.mxu0 0.0
  %1555 = vmatmul.mubr.f32.gmra.mxu0 %v1192
  %v1556 = vpop.f32.mrf.mxu0
  %v1557 = vadd.f32 %v1085, %v1556
  %v1558 = vpop.f32.mrf.mxu0
  %v1559 = vadd.f32 %v1085, %v1558
  %1560 = vmatprep.mubr.f32.mxu0 0.0
  %1561 = vmatmul.mubr.f32.gmra.mxu0 %v1195
  %v1562 = vpop.f32.mrf.mxu0
  %v1563 = vadd.f32 %v1090, %v1562
  %v1564 = vpop.f32.mrf.mxu0
  %v1565 = vadd.f32 %v1090, %v1564
  %1566 = vmatprep.mubr.f32.mxu0 0.0
  %1567 = vmatmul.mubr.f32.gmra.mxu0 %v1198
  %v1568 = vpop.f32.mrf.mxu0
  %v1569 = vadd.f32 %v1095, %v1568
  %v1570 = vpop.f32.mrf.mxu0
  %v1571 = vadd.f32 %v1095, %v1570
  %1572 = vmatprep.mubr.f32.mxu0 0.0
  %1573 = vmatmul.mubr.f32.gmra.mxu0 %v1201
  %v1574 = vpop.f32.mrf.mxu0
  %v1575 = vadd.f32 %v1100, %v1574
  %v1576 = vpop.f32.mrf.mxu0
  %v1577 = vadd.f32 %v1100, %v1576
  %1578 = vmatprep.mubr.f32.mxu0 0.0
  %1579 = vmatmul.mubr.f32.gmra.mxu0 %v1204
  %v1580 = vpop.f32.mrf.mxu0
  %v1581 = vadd.f32 %v1105, %v1580
  %v1582 = vpop.f32.mrf.mxu0
  %v1583 = vadd.f32 %v1105, %v1582
  %1584 = vmatprep.mubr.f32.mxu0 0.0
  %1585 = vmatmul.mubr.f32.gmra.mxu0 %v1207
  %v1586 = vpop.f32.mrf.mxu0
  %v1587 = vadd.f32 %v1110, %v1586
  %v1588 = vpop.f32.mrf.mxu0
  %v1589 = vadd.f32 %v1110, %v1588
  %1590 = vmatprep.mubr.f32.mxu0 0.0
  %1591 = vmatmul.mubr.f32.gmra.mxu0 %v1210
  %v1592 = vpop.f32.mrf.mxu0
  %v1593 = vadd.f32 %v1115, %v1592
  %v1594 = vpop.f32.mrf.mxu0
  %v1595 = vadd.f32 %v1115, %v1594
  %1596 = vmatprep.mubr.f32.mxu0 0.0
  %1597 = vmatmul.mubr.f32.gmra.mxu0 %v1213
  %v1598 = vpop.f32.mrf.mxu0
  %v1599 = vadd.f32 %v1120, %v1598
  %v1600 = vpop.f32.mrf.mxu0
  %v1601 = vadd.f32 %v1120, %v1600
  %1602 = vmatprep.mubr.f32.mxu0 0.0
  %1603 = vmatmul.mubr.f32.gmra.mxu0 %v1216
  %v1604 = vpop.f32.mrf.mxu0
  %v1605 = vadd.f32 %v1125, %v1604
  %v1606 = vpop.f32.mrf.mxu0
  %v1607 = vadd.f32 %v1125, %v1606
  %1608 = vmatprep.mubr.f32.mxu0 0.0
  %1609 = vmatmul.mubr.f32.gmra.mxu0 %v1219
  %v1610 = vpop.f32.mrf.mxu0
  %v1611 = vadd.f32 %v1130, %v1610
  %v1612 = vpop.f32.mrf.mxu0
  %v1613 = vadd.f32 %v1130, %v1612
  %1614 = vmatprep.mubr.f32.mxu0 0.0
  %1615 = vmatmul.mubr.f32.gmra.mxu0 %v1222
  %v1616 = vpop.f32.mrf.mxu0
  %v1617 = vadd.f32 %v1135, %v1616
  %v1618 = vpop.f32.mrf.mxu0
  %v1619 = vadd.f32 %v1135, %v1618
  %1620 = vmatprep.mubr.f32.mxu0 0.0
  %1621 = vmatmul.mubr.f32.gmra.mxu0 %v1225
  %v1622 = vpop.f32.mrf.mxu0
  %v1623 = vadd.f32 %v1140, %v1622
  %v1624 = vpop.f32.mrf.mxu0
  %v1625 = vadd.f32 %v1140, %v1624
  %1626 = vmatprep.mubr.f32.mxu0 0.0
  %1627 = vmatmul.mubr.f32.gmra.mxu0 %v1228
  %v1628 = vpop.f32.mrf.mxu0
  %v1629 = vadd.f32 %v1145, %v1628
  %v1630 = vpop.f32.mrf.mxu0
  %v1631 = vadd.f32 %v1145, %v1630
  %1632 = vmatprep.mubr.f32.mxu0 0.0
  %1633 = vmatmul.mubr.f32.gmra.mxu0 %v1231
  %v1634 = vpop.f32.mrf.mxu0
  %v1635 = vadd.f32 %v1150, %v1634
  %v1636 = vpop.f32.mrf.mxu0
  %v1637 = vadd.f32 %v1150, %v1636
  %1638 = vmatprep.mubr.f32.mxu0 0.0
  %1639 = vmatmul.mubr.f32.gmra.mxu0 %v1234
  %v1640 = vpop.f32.mrf.mxu0
  %v1641 = vadd.f32 %v1155, %v1640
  %v1642 = vpop.f32.mrf.mxu0
  %v1643 = vadd.f32 %v1155, %v1642
  %1644 = vmatprep.mubr.f32.mxu0 0.0
  %1645 = vmatmul.mubr.f32.gmra.mxu0 %v1237
  %v1646 = vpop.f32.mrf.mxu0
  %v1647 = vadd.f32 %v1160, %v1646
  %v1648 = vpop.f32.mrf.mxu0
  %v1649 = vadd.f32 %v1160, %v1648
  %1650 = vmatprep.mubr.f32.mxu0 0.0
  %1651 = vmatmul.mubr.f32.gmra.mxu0 %v1240
  %v1652 = vpop.f32.mrf.mxu0
  %v1653 = vadd.f32 %v1165, %v1652
  %v1654 = vpop.f32.mrf.mxu0
  %v1655 = vadd.f32 %v1165, %v1654
  %1656 = vmatprep.mubr.f32.mxu0 0.0
  %1657 = vmatmul.mubr.f32.gmra.mxu0 %v1243
  %v1658 = vpop.f32.mrf.mxu0
  %v1659 = vadd.f32 %v1170, %v1658
  %v1660 = vpop.f32.mrf.mxu0
  %v1661 = vadd.f32 %v1170, %v1660
  %1662 = vdwg.mxu0
  %1663 = vmatprep.subr.mxu0 0.0
  %1664 = vmatpush1.msra.mxu0 0.0
  %1665 = vmatprep.subr.mxu0 0.0
  %1666 = vmatpush1.msra.mxu0 0.0
  %1667 = vmatprep.subr.mxu0 0.0
  %1668 = vmatpush1.msra.mxu0 0.0
  %1669 = vmatprep.subr.mxu0 0.0
  %1670 = vmatpush1.msra.mxu0 0.0
  %1671 = vmatprep.subr.mxu0 0.0
  %1672 = vmatpush1.msra.mxu0 0.0
  %1673 = vmatprep.subr.mxu0 0.0
  %1674 = vmatpush1.msra.mxu0 0.0
  %1675 = vmatprep.subr.mxu0 0.0
  %1676 = vmatpush1.msra.mxu0 0.0
  %1677 = vmatprep.subr.mxu0 0.0
  %1678 = vmatpush1.msra.mxu0 0.0
  %1679 = vmatprep.subr.mxu0 0.0
  %1680 = vmatpush1.msra.mxu0 0.0
  %1681 = vmatprep.subr.mxu0 0.0
  %1682 = vmatpush1.msra.mxu0 0.0
  %1683 = vmatprep.subr.mxu0 %v1003
  %1684 = vmatpush1.msra.mxu0 %v1002
  %1685 = vmatprep.subr.mxu0 %v997
  %1686 = vmatpush1.msra.mxu0 %v996
  %1687 = vmatprep.subr.mxu0 %v991
  %1688 = vmatpush1.msra.mxu0 %v990
  %1689 = vmatprep.subr.mxu0 %v985
  %1690 = vmatpush1.msra.mxu0 %v984
  %1691 = vmatprep.subr.mxu0 %v979
  %1692 = vmatpush1.msra.mxu0 %v978
  %1693 = vmatprep.subr.mxu0 %v973
  %1694 = vmatpush1.msra.mxu0 %v972
  %1695 = vmatprep.subr.mxu0 0.0
  %1696 = vmatpush2.msra.mxu0 0.0
  %1697 = vmatprep.subr.mxu0 0.0
  %1698 = vmatpush2.msra.mxu0 0.0
  %1699 = vmatprep.subr.mxu0 0.0
  %1700 = vmatpush2.msra.mxu0 0.0
  %1701 = vmatprep.subr.mxu0 0.0
  %1702 = vmatpush2.msra.mxu0 0.0
  %1703 = vmatprep.subr.mxu0 0.0
  %1704 = vmatpush2.msra.mxu0 0.0
  %1705 = vmatprep.subr.mxu0 0.0
  %1706 = vmatpush2.msra.mxu0 0.0
  %1707 = vmatprep.subr.mxu0 0.0
  %1708 = vmatpush2.msra.mxu0 0.0
  %1709 = vmatprep.subr.mxu0 0.0
  %1710 = vmatpush2.msra.mxu0 0.0
  %1711 = vmatprep.subr.mxu0 0.0
  %1712 = vmatpush2.msra.mxu0 0.0
  %1713 = vmatprep.subr.mxu0 0.0
  %1714 = vmatpush2.msra.mxu0 0.0
  %1715 = vmatprep.subr.mxu0 0.0
  %1716 = vmatpush2.msra.mxu0 0.0
  %1717 = vmatprep.subr.mxu0 0.0
  %1718 = vmatpush2.msra.mxu0 0.0
  %1719 = vmatprep.subr.mxu0 0.0
  %1720 = vmatpush2.msra.mxu0 0.0
  %1721 = vmatprep.subr.mxu0 0.0
  %1722 = vmatpush2.msra.mxu0 0.0
  %1723 = vmatprep.subr.mxu0 0.0
  %1724 = vmatpush2.msra.mxu0 0.0
  %1725 = vmatprep.subr.mxu0 0.0
  %1726 = vmatpush2.msra.mxu0 0.0
  %1727 = vmatprep.mubr.f32.mxu0 0.0
  %1728 = vmatmul.mubr.f32.gmra.mxu0 %v1174
  %v1729 = vpop.f32.mrf.mxu0
  %v1730 = vadd.f32 %v1055, %v1729
  %v1731 = vpop.f32.mrf.mxu0
  %v1732 = vadd.f32 %v1055, %v1731
  %1733 = vmatprep.mubr.f32.mxu0 0.0
  %1734 = vmatmul.mubr.f32.gmra.mxu0 %v1177
  %v1735 = vpop.f32.mrf.mxu0
  %v1736 = vadd.f32 %v1060, %v1735
  %v1737 = vpop.f32.mrf.mxu0
  %v1738 = vadd.f32 %v1060, %v1737
  %1739 = vmatprep.mubr.f32.mxu0 0.0
  %1740 = vmatmul.mubr.f32.gmra.mxu0 %v1180
  %v1741 = vpop.f32.mrf.mxu0
  %v1742 = vadd.f32 %v1065, %v1741
  %v1743 = vpop.f32.mrf.mxu0
  %v1744 = vadd.f32 %v1065, %v1743
  %1745 = vmatprep.mubr.f32.mxu0 0.0
  %1746 = vmatmul.mubr.f32.gmra.mxu0 %v1183
  %v1747 = vpop.f32.mrf.mxu0
  %v1748 = vadd.f32 %v1070, %v1747
  %v1749 = vpop.f32.mrf.mxu0
  %v1750 = vadd.f32 %v1070, %v1749
  %1751 = vmatprep.mubr.f32.mxu0 0.0
  %1752 = vmatmul.mubr.f32.gmra.mxu0 %v1186
  %v1753 = vpop.f32.mrf.mxu0
  %v1754 = vadd.f32 %v1075, %v1753
  %v1755 = vpop.f32.mrf.mxu0
  %v1756 = vadd.f32 %v1075, %v1755
  %1757 = vmatprep.mubr.f32.mxu0 0.0
  %1758 = vmatmul.mubr.f32.gmra.mxu0 %v1189
  %v1759 = vpop.f32.mrf.mxu0
  %v1760 = vadd.f32 %v1080, %v1759
  %v1761 = vpop.f32.mrf.mxu0
  %v1762 = vadd.f32 %v1080, %v1761
  %1763 = vmatprep.mubr.f32.mxu0 0.0
  %1764 = vmatmul.mubr.f32.gmra.mxu0 %v1192
  %v1765 = vpop.f32.mrf.mxu0
  %v1766 = vadd.f32 %v1085, %v1765
  %v1767 = vpop.f32.mrf.mxu0
  %v1768 = vadd.f32 %v1085, %v1767
  %1769 = vmatprep.mubr.f32.mxu0 0.0
  %1770 = vmatmul.mubr.f32.gmra.mxu0 %v1195
  %v1771 = vpop.f32.mrf.mxu0
  %v1772 = vadd.f32 %v1090, %v1771
  %v1773 = vpop.f32.mrf.mxu0
  %v1774 = vadd.f32 %v1090, %v1773
  %1775 = vmatprep.mubr.f32.mxu0 0.0
  %1776 = vmatmul.mubr.f32.gmra.mxu0 %v1198
  %v1777 = vpop.f32.mrf.mxu0
  %v1778 = vadd.f32 %v1095, %v1777
  %v1779 = vpop.f32.mrf.mxu0
  %v1780 = vadd.f32 %v1095, %v1779
  %1781 = vmatprep.mubr.f32.mxu0 0.0
  %1782 = vmatmul.mubr.f32.gmra.mxu0 %v1201
  %v1783 = vpop.f32.mrf.mxu0
  %v1784 = vadd.f32 %v1100, %v1783
  %v1785 = vpop.f32.mrf.mxu0
  %v1786 = vadd.f32 %v1100, %v1785
  %1787 = vmatprep.mubr.f32.mxu0 0.0
  %1788 = vmatmul.mubr.f32.gmra.mxu0 %v1204
  %v1789 = vpop.f32.mrf.mxu0
  %v1790 = vadd.f32 %v1105, %v1789
  %v1791 = vpop.f32.mrf.mxu0
  %v1792 = vadd.f32 %v1105, %v1791
  %1793 = vmatprep.mubr.f32.mxu0 0.0
  %1794 = vmatmul.mubr.f32.gmra.mxu0 %v1207
  %v1795 = vpop.f32.mrf.mxu0
  %v1796 = vadd.f32 %v1110, %v1795
  %v1797 = vpop.f32.mrf.mxu0
  %v1798 = vadd.f32 %v1110, %v1797
  %1799 = vmatprep.mubr.f32.mxu0 0.0
  %1800 = vmatmul.mubr.f32.gmra.mxu0 %v1210
  %v1801 = vpop.f32.mrf.mxu0
  %v1802 = vadd.f32 %v1115, %v1801
  %v1803 = vpop.f32.mrf.mxu0
  %v1804 = vadd.f32 %v1115, %v1803
  %1805 = vmatprep.mubr.f32.mxu0 0.0
  %1806 = vmatmul.mubr.f32.gmra.mxu0 %v1213
  %v1807 = vpop.f32.mrf.mxu0
  %v1808 = vadd.f32 %v1120, %v1807
  %v1809 = vpop.f32.mrf.mxu0
  %v1810 = vadd.f32 %v1120, %v1809
  %1811 = vmatprep.mubr.f32.mxu0 0.0
  %1812 = vmatmul.mubr.f32.gmra.mxu0 %v1216
  %v1813 = vpop.f32.mrf.mxu0
  %v1814 = vadd.f32 %v1125, %v1813
  %v1815 = vpop.f32.mrf.mxu0
  %v1816 = vadd.f32 %v1125, %v1815
  %1817 = vmatprep.mubr.f32.mxu0 0.0
  %1818 = vmatmul.mubr.f32.gmra.mxu0 %v1219
  %v1819 = vpop.f32.mrf.mxu0
  %v1820 = vadd.f32 %v1130, %v1819
  %v1821 = vpop.f32.mrf.mxu0
  %v1822 = vadd.f32 %v1130, %v1821
  %1823 = vmatprep.mubr.f32.mxu0 0.0
  %1824 = vmatmul.mubr.f32.gmra.mxu0 %v1222
  %v1825 = vpop.f32.mrf.mxu0
  %v1826 = vadd.f32 %v1135, %v1825
  %v1827 = vpop.f32.mrf.mxu0
  %v1828 = vadd.f32 %v1135, %v1827
  %1829 = vmatprep.mubr.f32.mxu0 0.0
  %1830 = vmatmul.mubr.f32.gmra.mxu0 %v1225
  %v1831 = vpop.f32.mrf.mxu0
  %v1832 = vadd.f32 %v1140, %v1831
  %v1833 = vpop.f32.mrf.mxu0
  %v1834 = vadd.f32 %v1140, %v1833
  %1835 = vmatprep.mubr.f32.mxu0 0.0
  %1836 = vmatmul.mubr.f32.gmra.mxu0 %v1228
  %v1837 = vpop.f32.mrf.mxu0
  %v1838 = vadd.f32 %v1145, %v1837
  %v1839 = vpop.f32.mrf.mxu0
  %v1840 = vadd.f32 %v1145, %v1839
  %1841 = vmatprep.mubr.f32.mxu0 0.0
  %1842 = vmatmul.mubr.f32.gmra.mxu0 %v1231
  %v1843 = vpop.f32.mrf.mxu0
  %v1844 = vadd.f32 %v1150, %v1843
  %v1845 = vpop.f32.mrf.mxu0
  %v1846 = vadd.f32 %v1150, %v1845
  %1847 = vmatprep.mubr.f32.mxu0 0.0
  %1848 = vmatmul.mubr.f32.gmra.mxu0 %v1234
  %v1849 = vpop.f32.mrf.mxu0
  %v1850 = vadd.f32 %v1155, %v1849
  %v1851 = vpop.f32.mrf.mxu0
  %v1852 = vadd.f32 %v1155, %v1851
  %1853 = vmatprep.mubr.f32.mxu0 0.0
  %1854 = vmatmul.mubr.f32.gmra.mxu0 %v1237
  %v1855 = vpop.f32.mrf.mxu0
  %v1856 = vadd.f32 %v1160, %v1855
  %v1857 = vpop.f32.mrf.mxu0
  %v1858 = vadd.f32 %v1160, %v1857
  %1859 = vmatprep.mubr.f32.mxu0 0.0
  %1860 = vmatmul.mubr.f32.gmra.mxu0 %v1240
  %v1861 = vpop.f32.mrf.mxu0
  %v1862 = vadd.f32 %v1165, %v1861
  %v1863 = vpop.f32.mrf.mxu0
  %v1864 = vadd.f32 %v1165, %v1863
  %1865 = vmatprep.mubr.f32.mxu0 0.0
  %1866 = vmatmul.mubr.f32.gmra.mxu0 %v1243
  %v1867 = vpop.f32.mrf.mxu0
  %v1868 = vadd.f32 %v1170, %v1867
  %v1869 = vpop.f32.mrf.mxu0
  %v1870 = vadd.f32 %v1170, %v1869
  %1871 = vdwg.mxu0
  %v1872 = vmax.f32 %v1312, 0.0
  %v1873 = vmax.f32 %v1314, 0.0
  %v1874 = vmax.f32 %v1521, 0.0
  %v1875 = vmax.f32 %v1523, 0.0
  %v1876 = vmax.f32 %v1730, 0.0
  %v1877 = vmax.f32 %v1732, 0.0
  %v1878 = vmax.f32 %v1318, 0.0
  %v1879 = vmax.f32 %v1320, 0.0
  %v1880 = vmax.f32 %v1527, 0.0
  %v1881 = vmax.f32 %v1529, 0.0
  %v1882 = vmax.f32 %v1736, 0.0
  %v1883 = vmax.f32 %v1738, 0.0
  %v1884 = vmax.f32 %v1324, 0.0
  %v1885 = vmax.f32 %v1326, 0.0
  %v1886 = vmax.f32 %v1533, 0.0
  %v1887 = vmax.f32 %v1535, 0.0
  %v1888 = vmax.f32 %v1742, 0.0
  %v1889 = vmax.f32 %v1744, 0.0
  %v1890 = vmax.f32 %v1330, 0.0
  %v1891 = vmax.f32 %v1332, 0.0
  %v1892 = vmax.f32 %v1539, 0.0
  %v1893 = vmax.f32 %v1541, 0.0
  %v1894 = vmax.f32 %v1748, 0.0
  %v1895 = vmax.f32 %v1750, 0.0
  %v1896 = vmax.f32 %v1336, 0.0
  %v1897 = vmax.f32 %v1338, 0.0
  %v1898 = vmax.f32 %v1545, 0.0
  %v1899 = vmax.f32 %v1547, 0.0
  %v1900 = vmax.f32 %v1754, 0.0
  %v1901 = vmax.f32 %v1756, 0.0
  %v1902 = vmax.f32 %v1342, 0.0
  %v1903 = vmax.f32 %v1344, 0.0
  %v1904 = vmax.f32 %v1551, 0.0
  %v1905 = vmax.f32 %v1553, 0.0
  %v1906 = vmax.f32 %v1760, 0.0
  %v1907 = vmax.f32 %v1762, 0.0
  %v1908 = vmax.f32 %v1348, 0.0
  %v1909 = vmax.f32 %v1350, 0.0
  %v1910 = vmax.f32 %v1557, 0.0
  %v1911 = vmax.f32 %v1559, 0.0
  %v1912 = vmax.f32 %v1766, 0.0
  %v1913 = vmax.f32 %v1768, 0.0
  %v1914 = vmax.f32 %v1354, 0.0
  %v1915 = vmax.f32 %v1356, 0.0
  %v1916 = vmax.f32 %v1563, 0.0
  %v1917 = vmax.f32 %v1565, 0.0
  %v1918 = vmax.f32 %v1772, 0.0
  %v1919 = vmax.f32 %v1774, 0.0
  %v1920 = vmax.f32 %v1360, 0.0
  %v1921 = vmax.f32 %v1362, 0.0
  %v1922 = vmax.f32 %v1569, 0.0
  %v1923 = vmax.f32 %v1571, 0.0
  %v1924 = vmax.f32 %v1778, 0.0
  %v1925 = vmax.f32 %v1780, 0.0
  %v1926 = vmax.f32 %v1366, 0.0
  %v1927 = vmax.f32 %v1368, 0.0
  %v1928 = vmax.f32 %v1575, 0.0
  %v1929 = vmax.f32 %v1577, 0.0
  %v1930 = vmax.f32 %v1784, 0.0
  %v1931 = vmax.f32 %v1786, 0.0
  %v1932 = vmax.f32 %v1372, 0.0
  %v1933 = vmax.f32 %v1374, 0.0
  %v1934 = vmax.f32 %v1581, 0.0
  %v1935 = vmax.f32 %v1583, 0.0
  %v1936 = vmax.f32 %v1790, 0.0
  %v1937 = vmax.f32 %v1792, 0.0
  %v1938 = vmax.f32 %v1378, 0.0
  %v1939 = vmax.f32 %v1380, 0.0
  %v1940 = vmax.f32 %v1587, 0.0
  %v1941 = vmax.f32 %v1589, 0.0
  %v1942 = vmax.f32 %v1796, 0.0
  %v1943 = vmax.f32 %v1798, 0.0
  %v1944 = vmax.f32 %v1384, 0.0
  %v1945 = vmax.f32 %v1386, 0.0
  %v1946 = vmax.f32 %v1593, 0.0
  %v1947 = vmax.f32 %v1595, 0.0
  %v1948 = vmax.f32 %v1802, 0.0
  %v1949 = vmax.f32 %v1804, 0.0
  %v1950 = vmax.f32 %v1390, 0.0
  %v1951 = vmax.f32 %v1392, 0.0
  %v1952 = vmax.f32 %v1599, 0.0
  %v1953 = vmax.f32 %v1601, 0.0
  %v1954 = vmax.f32 %v1808, 0.0
  %v1955 = vmax.f32 %v1810, 0.0
  %v1956 = vmax.f32 %v1396, 0.0
  %v1957 = vmax.f32 %v1398, 0.0
  %v1958 = vmax.f32 %v1605, 0.0
  %v1959 = vmax.f32 %v1607, 0.0
  %v1960 = vmax.f32 %v1814, 0.0
  %v1961 = vmax.f32 %v1816, 0.0
  %v1962 = vmax.f32 %v1402, 0.0
  %v1963 = vmax.f32 %v1404, 0.0
  %v1964 = vmax.f32 %v1611, 0.0
  %v1965 = vmax.f32 %v1613, 0.0
  %v1966 = vmax.f32 %v1820, 0.0
  %v1967 = vmax.f32 %v1822, 0.0
  %v1968 = vmax.f32 %v1408, 0.0
  %v1969 = vmax.f32 %v1410, 0.0
  %v1970 = vmax.f32 %v1617, 0.0
  %v1971 = vmax.f32 %v1619, 0.0
  %v1972 = vmax.f32 %v1826, 0.0
  %v1973 = vmax.f32 %v1828, 0.0
  %v1974 = vmax.f32 %v1414, 0.0
  %v1975 = vmax.f32 %v1416, 0.0
  %v1976 = vmax.f32 %v1623, 0.0
  %v1977 = vmax.f32 %v1625, 0.0
  %v1978 = vmax.f32 %v1832, 0.0
  %v1979 = vmax.f32 %v1834, 0.0
  %v1980 = vmax.f32 %v1420, 0.0
  %v1981 = vmax.f32 %v1422, 0.0
  %v1982 = vmax.f32 %v1629, 0.0
  %v1983 = vmax.f32 %v1631, 0.0
  %v1984 = vmax.f32 %v1838, 0.0
  %v1985 = vmax.f32 %v1840, 0.0
  %v1986 = vmax.f32 %v1426, 0.0
  %v1987 = vmax.f32 %v1428, 0.0
  %v1988 = vmax.f32 %v1635, 0.0
  %v1989 = vmax.f32 %v1637, 0.0
  %v1990 = vmax.f32 %v1844, 0.0
  %v1991 = vmax.f32 %v1846, 0.0
  %v1992 = vmax.f32 %v1432, 0.0
  %v1993 = vmax.f32 %v1434, 0.0
  %v1994 = vmax.f32 %v1641, 0.0
  %v1995 = vmax.f32 %v1643, 0.0
  %v1996 = vmax.f32 %v1850, 0.0
  %v1997 = vmax.f32 %v1852, 0.0
  %v1998 = vmax.f32 %v1438, 0.0
  %v1999 = vmax.f32 %v1440, 0.0
  %v2000 = vmax.f32 %v1647, 0.0
  %v2001 = vmax.f32 %v1649, 0.0
  %v2002 = vmax.f32 %v1856, 0.0
  %v2003 = vmax.f32 %v1858, 0.0
  %v2004 = vmax.f32 %v1444, 0.0
  %v2005 = vmax.f32 %v1446, 0.0
  %v2006 = vmax.f32 %v1653, 0.0
  %v2007 = vmax.f32 %v1655, 0.0
  %v2008 = vmax.f32 %v1862, 0.0
  %v2009 = vmax.f32 %v1864, 0.0
  %v2010 = vmax.f32 %v1450, 0.0
  %v2011 = vmax.f32 %v1452, 0.0
  %v2012 = vmax.f32 %v1659, 0.0
  %v2013 = vmax.f32 %v1661, 0.0
  %v2014 = vmax.f32 %v1868, 0.0
  %v2015 = vmax.f32 %v1870, 0.0
  %2016 = vst [vmem:[%s5] sm:$0xff] %v1872
  %2017 = vst [vmem:[%s5 + $0x8] sm:$0xff] %v1873
  %2018 = vst [vmem:[%s5 + $0x10] sm:$0xff] %v1874
  %2019 = vst [vmem:[%s5 + $0x18] sm:$0xff] %v1875
  %2020 = vst [vmem:[%s5 + $0x20] sm:$0xff] %v1876
  %vm2021 = vcmask 728064
  %2022 = vst.msk [vmem:[%s5 + $0x28] sm:$0xff] %vm2021, %v1877
  %2023 = vst [vmem:[%s5 + $0x30] sm:$0xff] %v1878
  %2024 = vst [vmem:[%s5 + $0x38] sm:$0xff] %v1879
  %2025 = vst [vmem:[%s5 + $0x40] sm:$0xff] %v1880
  %2026 = vst [vmem:[%s5 + $0x48] sm:$0xff] %v1881
  %2027 = vst [vmem:[%s5 + $0x50] sm:$0xff] %v1882
  %2028 = vst.msk [vmem:[%s5 + $0x58] sm:$0xff] %vm2021, %v1883
  %2029 = vst [vmem:[%s5 + $0x60] sm:$0xff] %v1884
  %2030 = vst [vmem:[%s5 + $0x68] sm:$0xff] %v1885
  %2031 = vst [vmem:[%s5 + $0x70] sm:$0xff] %v1886
  %2032 = vst [vmem:[%s5 + $0x78] sm:$0xff] %v1887
  %2033 = vst [vmem:[%s5 + $0x80] sm:$0xff] %v1888
  %2034 = vst.msk [vmem:[%s5 + $0x88] sm:$0xff] %vm2021, %v1889
  %2035 = vst [vmem:[%s5 + $0x90] sm:$0xff] %v1890
  %2036 = vst [vmem:[%s5 + $0x98] sm:$0xff] %v1891
  %2037 = vst [vmem:[%s5 + $0xa0] sm:$0xff] %v1892
  %2038 = vst [vmem:[%s5 + $0xa8] sm:$0xff] %v1893
  %2039 = vst [vmem:[%s5 + $0xb0] sm:$0xff] %v1894
  %2040 = vst.msk [vmem:[%s5 + $0xb8] sm:$0xff] %vm2021, %v1895
  %2041 = vst [vmem:[%s5 + $0xc0] sm:$0xff] %v1896
  %2042 = vst [vmem:[%s5 + $0xc8] sm:$0xff] %v1897
  %2043 = vst [vmem:[%s5 + $0xd0] sm:$0xff] %v1898
  %2044 = vst [vmem:[%s5 + $0xd8] sm:$0xff] %v1899
  %2045 = vst [vmem:[%s5 + $0xe0] sm:$0xff] %v1900
  %2046 = vst.msk [vmem:[%s5 + $0xe8] sm:$0xff] %vm2021, %v1901
  %2047 = vst [vmem:[%s5 + $0xf0] sm:$0xff] %v1902
  %2048 = vst [vmem:[%s5 + $0xf8] sm:$0xff] %v1903
  %2049 = vst [vmem:[%s5 + $0x100] sm:$0xff] %v1904
  %2050 = vst [vmem:[%s5 + $0x108] sm:$0xff] %v1905
  %2051 = vst [vmem:[%s5 + $0x110] sm:$0xff] %v1906
  %2052 = vst.msk [vmem:[%s5 + $0x118] sm:$0xff] %vm2021, %v1907
  %2053 = vst [vmem:[%s5 + $0x120] sm:$0xff] %v1908
  %2054 = vst [vmem:[%s5 + $0x128] sm:$0xff] %v1909
  %2055 = vst [vmem:[%s5 + $0x130] sm:$0xff] %v1910
  %2056 = vst [vmem:[%s5 + $0x138] sm:$0xff] %v1911
  %2057 = vst [vmem:[%s5 + $0x140] sm:$0xff] %v1912
  %2058 = vst.msk [vmem:[%s5 + $0x148] sm:$0xff] %vm2021, %v1913
  %2059 = vst [vmem:[%s5 + $0x150] sm:$0xff] %v1914
  %2060 = vst [vmem:[%s5 + $0x158] sm:$0xff] %v1915
  %2061 = vst [vmem:[%s5 + $0x160] sm:$0xff] %v1916
  %2062 = vst [vmem:[%s5 + $0x168] sm:$0xff] %v1917
  %2063 = vst [vmem:[%s5 + $0x170] sm:$0xff] %v1918
  %2064 = vst.msk [vmem:[%s5 + $0x178] sm:$0xff] %vm2021, %v1919
  %2065 = vst [vmem:[%s5 + $0x180] sm:$0xff] %v1920
  %2066 = vst [vmem:[%s5 + $0x188] sm:$0xff] %v1921
  %2067 = vst [vmem:[%s5 + $0x190] sm:$0xff] %v1922
  %2068 = vst [vmem:[%s5 + $0x198] sm:$0xff] %v1923
  %2069 = vst [vmem:[%s5 + $0x1a0] sm:$0xff] %v1924
  %2070 = vst.msk [vmem:[%s5 + $0x1a8] sm:$0xff] %vm2021, %v1925
  %2071 = vst [vmem:[%s5 + $0x1b0] sm:$0xff] %v1926
  %2072 = vst [vmem:[%s5 + $0x1b8] sm:$0xff] %v1927
  %2073 = vst [vmem:[%s5 + $0x1c0] sm:$0xff] %v1928
  %2074 = vst [vmem:[%s5 + $0x1c8] sm:$0xff] %v1929
  %2075 = vst [vmem:[%s5 + $0x1d0] sm:$0xff] %v1930
  %2076 = vst.msk [vmem:[%s5 + $0x1d8] sm:$0xff] %vm2021, %v1931
  %2077 = vst [vmem:[%s5 + $0x1e0] sm:$0xff] %v1932
  %2078 = vst [vmem:[%s5 + $0x1e8] sm:$0xff] %v1933
  %2079 = vst [vmem:[%s5 + $0x1f0] sm:$0xff] %v1934
  %2080 = vst [vmem:[%s5 + $0x1f8] sm:$0xff] %v1935
  %2081 = vst [vmem:[%s5 + $0x200] sm:$0xff] %v1936
  %2082 = vst.msk [vmem:[%s5 + $0x208] sm:$0xff] %vm2021, %v1937
  %2083 = vst [vmem:[%s5 + $0x210] sm:$0xff] %v1938
  %2084 = vst [vmem:[%s5 + $0x218] sm:$0xff] %v1939
  %2085 = vst [vmem:[%s5 + $0x220] sm:$0xff] %v1940
  %2086 = vst [vmem:[%s5 + $0x228] sm:$0xff] %v1941
  %2087 = vst [vmem:[%s5 + $0x230] sm:$0xff] %v1942
  %2088 = vst.msk [vmem:[%s5 + $0x238] sm:$0xff] %vm2021, %v1943
  %2089 = vst [vmem:[%s5 + $0x240] sm:$0xff] %v1944
  %2090 = vst [vmem:[%s5 + $0x248] sm:$0xff] %v1945
  %2091 = vst [vmem:[%s5 + $0x250] sm:$0xff] %v1946
  %2092 = vst [vmem:[%s5 + $0x258] sm:$0xff] %v1947
  %2093 = vst [vmem:[%s5 + $0x260] sm:$0xff] %v1948
  %2094 = vst.msk [vmem:[%s5 + $0x268] sm:$0xff] %vm2021, %v1949
  %2095 = vst [vmem:[%s5 + $0x270] sm:$0xff] %v1950
  %2096 = vst [vmem:[%s5 + $0x278] sm:$0xff] %v1951
  %2097 = vst [vmem:[%s5 + $0x280] sm:$0xff] %v1952
  %2098 = vst [vmem:[%s5 + $0x288] sm:$0xff] %v1953
  %2099 = vst [vmem:[%s5 + $0x290] sm:$0xff] %v1954
  %2100 = vst.msk [vmem:[%s5 + $0x298] sm:$0xff] %vm2021, %v1955
  %2101 = vst [vmem:[%s5 + $0x2a0] sm:$0xff] %v1956
  %2102 = vst [vmem:[%s5 + $0x2a8] sm:$0xff] %v1957
  %2103 = vst [vmem:[%s5 + $0x2b0] sm:$0xff] %v1958
  %2104 = vst [vmem:[%s5 + $0x2b8] sm:$0xff] %v1959
  %2105 = vst [vmem:[%s5 + $0x2c0] sm:$0xff] %v1960
  %2106 = vst.msk [vmem:[%s5 + $0x2c8] sm:$0xff] %vm2021, %v1961
  %2107 = vst [vmem:[%s5 + $0x2d0] sm:$0xff] %v1962
  %2108 = vst [vmem:[%s5 + $0x2d8] sm:$0xff] %v1963
  %2109 = vst [vmem:[%s5 + $0x2e0] sm:$0xff] %v1964
  %2110 = vst [vmem:[%s5 + $0x2e8] sm:$0xff] %v1965
  %2111 = vst [vmem:[%s5 + $0x2f0] sm:$0xff] %v1966
  %2112 = vst.msk [vmem:[%s5 + $0x2f8] sm:$0xff] %vm2021, %v1967
  %2113 = vst [vmem:[%s5 + $0x300] sm:$0xff] %v1968
  %2114 = vst [vmem:[%s5 + $0x308] sm:$0xff] %v1969
  %2115 = vst [vmem:[%s5 + $0x310] sm:$0xff] %v1970
  %2116 = vst [vmem:[%s5 + $0x318] sm:$0xff] %v1971
  %2117 = vst [vmem:[%s5 + $0x320] sm:$0xff] %v1972
  %2118 = vst.msk [vmem:[%s5 + $0x328] sm:$0xff] %vm2021, %v1973
  %2119 = vst [vmem:[%s5 + $0x330] sm:$0xff] %v1974
  %2120 = vst [vmem:[%s5 + $0x338] sm:$0xff] %v1975
  %2121 = vst [vmem:[%s5 + $0x340] sm:$0xff] %v1976
  %2122 = vst [vmem:[%s5 + $0x348] sm:$0xff] %v1977
  %2123 = vst [vmem:[%s5 + $0x350] sm:$0xff] %v1978
  %2124 = vst.msk [vmem:[%s5 + $0x358] sm:$0xff] %vm2021, %v1979
  %2125 = vst [vmem:[%s5 + $0x360] sm:$0xff] %v1980
  %2126 = vst [vmem:[%s5 + $0x368] sm:$0xff] %v1981
  %2127 = vst [vmem:[%s5 + $0x370] sm:$0xff] %v1982
  %2128 = vst [vmem:[%s5 + $0x378] sm:$0xff] %v1983
  %2129 = vst [vmem:[%s5 + $0x380] sm:$0xff] %v1984
  %2130 = vst.msk [vmem:[%s5 + $0x388] sm:$0xff] %vm2021, %v1985
  %2131 = vst [vmem:[%s5 + $0x390] sm:$0xff] %v1986
  %2132 = vst [vmem:[%s5 + $0x398] sm:$0xff] %v1987
  %2133 = vst [vmem:[%s5 + $0x3a0] sm:$0xff] %v1988
  %2134 = vst [vmem:[%s5 + $0x3a8] sm:$0xff] %v1989
  %2135 = vst [vmem:[%s5 + $0x3b0] sm:$0xff] %v1990
  %2136 = vst.msk [vmem:[%s5 + $0x3b8] sm:$0xff] %vm2021, %v1991
  %2137 = vst [vmem:[%s5 + $0x3c0] sm:$0xff] %v1992
  %2138 = vst [vmem:[%s5 + $0x3c8] sm:$0xff] %v1993
  %2139 = vst [vmem:[%s5 + $0x3d0] sm:$0xff] %v1994
  %2140 = vst [vmem:[%s5 + $0x3d8] sm:$0xff] %v1995
  %2141 = vst [vmem:[%s5 + $0x3e0] sm:$0xff] %v1996
  %2142 = vst.msk [vmem:[%s5 + $0x3e8] sm:$0xff] %vm2021, %v1997
  %2143 = vst [vmem:[%s5 + $0x3f0] sm:$0xff] %v1998
  %2144 = vst [vmem:[%s5 + $0x3f8] sm:$0xff] %v1999
  %2145 = vst [vmem:[%s5 + $0x400] sm:$0xff] %v2000
  %2146 = vst [vmem:[%s5 + $0x408] sm:$0xff] %v2001
  %2147 = vst [vmem:[%s5 + $0x410] sm:$0xff] %v2002
  %2148 = vst.msk [vmem:[%s5 + $0x418] sm:$0xff] %vm2021, %v2003
  %2149 = vst [vmem:[%s5 + $0x420] sm:$0xff] %v2004
  %2150 = vst [vmem:[%s5 + $0x428] sm:$0xff] %v2005
  %2151 = vst [vmem:[%s5 + $0x430] sm:$0xff] %v2006
  %2152 = vst [vmem:[%s5 + $0x438] sm:$0xff] %v2007
  %2153 = vst [vmem:[%s5 + $0x440] sm:$0xff] %v2008
  %2154 = vst.msk [vmem:[%s5 + $0x448] sm:$0xff] %vm2021, %v2009
  %2155 = vst [vmem:[%s5 + $0x450] sm:$0xff] %v2010
  %2156 = vst [vmem:[%s5 + $0x458] sm:$0xff] %v2011
  %2157 = vst [vmem:[%s5 + $0x460] sm:$0xff] %v2012
  %2158 = vst [vmem:[%s5 + $0x468] sm:$0xff] %v2013
  %2159 = vst [vmem:[%s5 + $0x470] sm:$0xff] %v2014
  %2160 = vst.msk [vmem:[%s5 + $0x478] sm:$0xff] %vm2021, %v2015
  // Predicated region
  $region22: #{fused_conv_relu_conv_relu.1} parent=0 // pred_check
    _
  $region23: #{fused_conv_relu_conv_relu.1} parent=0 // pred_check_branch
    %2162 = sbr.rel (0) target = $region25
  $region24: #{fused_conv_relu_conv_relu.1} parent=0 // pred_region
    _
  $region25: #{fused_conv_relu_conv_relu.1} parent=0 // pred_fallthru
    _
  // Predicated region
  $region26: #{fused_conv_relu_conv_relu.1} parent=0 // pred_check
    _
  $region27: #{fused_conv_relu_conv_relu.1} parent=0 // pred_check_branch
    %2164 = sbr.rel (0) target = $region29
  $region28: #{fused_conv_relu_conv_relu.1} parent=0 // pred_region
    _
  $region29: #{fused_conv_relu_conv_relu.1} parent=0 // pred_fallthru
    _

</llo_original>
